<compile_context>
chip_gen: v5e
topology: v5e:2x2
jax: 0.10.0
libtpu: 0.0.40
codegen_flags: <defaults>
</compile_context>

<pallas_src>
import functools

import jax
import jax.numpy as jnp
from jax import lax
from jax.experimental import pallas as pl
from jax.experimental.pallas import tpu as pltpu

EPS = 1e-5


# ------------------------------ fused Pallas kernel ---------------------------

def _fused_kernel(xh_ref, xlr_ref, wfh_ref, sfh_ref, bfh_ref, teca_ref,
                  wbl_ref, sbl_ref, bbl_ref, sa_ref, s2_ref, wcat_ref,
                  spost_ref, bpost_ref, o_ref, *, HW, C):
    f32 = jnp.float32
    bf16 = jnp.bfloat16

    # --- feature_high: 1x1 conv (MXU, bf16) + folded BN + ReLU ----------------
    xh = xh_ref[0]                                              # (HW, Chi) f32
    xh_f = jnp.dot(xh.astype(bf16), wfh_ref[...],
                   preferred_element_type=f32)                  # (HW, C)
    xh_f = jnp.maximum(xh_f * sfh_ref[...] + bfh_ref[...], 0.0)

    # --- topdown (ECA channel attention): GAP -> conv1d(k=3) -> sigmoid -------
    p = jnp.mean(xh_f, axis=0, keepdims=True)                   # (1, C)
    p8 = jnp.broadcast_to(p, (8, C))                            # sublane-friendly M
    tdw = jax.nn.sigmoid(
        jnp.dot(p8, teca_ref[...], preferred_element_type=f32))[0:1, :]  # (1, C)
    td = xh_f * tdw                                             # topdown_wei
    z = xlr_ref[0] * td                                         # xl_resized * topdown_wei

    # --- bottomup bottleneck: 1x1 conv + BN + ReLU, channel mean/max ----------
    u = jnp.dot(z.astype(bf16), wbl_ref[...], preferred_element_type=f32)
    u = jnp.maximum(u * sbl_ref[...] + bbl_ref[...], 0.0)        # (HW, Cb)
    avg = jnp.mean(u, axis=1, keepdims=True)                     # (HW, 1)
    mx = jnp.max(u, axis=1, keepdims=True)                       # (HW, 1)

    # --- SpatialAttention 3x3 (2->1) + sigmoid as one matmul ------------------
    # sa_ref = [SA_avg | SA_max] (HW, 2HW); broadcast the (2HW,1) stats across
    # lanes so the matmul output is already (HW, C) ready for broadcasting.
    am = jnp.broadcast_to(jnp.concatenate([avg, mx], axis=0), (2 * HW, C))
    bw = jax.nn.sigmoid(jnp.dot(sa_ref[...], am,
                                preferred_element_type=f32))     # (HW, C) (cols equal)

    # --- post 3x3 conv + BN + ReLU on both branches (2x folded into weights) --
    # Stack xs1 = 2*z and xs2 = 2*xh_f*bw along rows; one K=C, N=9C matmul
    # with the tap-concatenated weights, then 9 block-diagonal 0/1 spatial
    # shift matmuls (exact, f32) implement the SAME-padded 3x3 conv.
    x2 = jnp.concatenate([z, xh_f * bw], axis=0)                 # (2HW, C)
    a = jnp.dot(x2.astype(bf16), wcat_ref[...],
                preferred_element_type=f32)                      # (2HW, 9C)
    acc = jnp.zeros((2 * HW, C), f32)
    for k in range(9):
        acc = acc + jnp.dot(s2_ref[k], a[:, k * C:(k + 1) * C],
                            preferred_element_type=f32)
    y = jnp.maximum(acc * spost_ref[...] + bpost_ref[...], 0.0)  # (2HW, C)

    # lane-dense 128-wide store: [out1 | out2] on the last axis
    o_ref[0] = jnp.concatenate([y[:HW, :], y[HW:, :]], axis=1).astype(o_ref.dtype)


# ------------------------------ glue / wrapper --------------------------------

def interp_matrix(n_in, n_out):
    # bilinear interpolation matrix, align_corners=True (torch semantics)
    if n_out == 1:
        return jnp.zeros((1, n_in), jnp.float32).at[0, 0].set(1.0)
    s = jnp.arange(n_out, dtype=jnp.float32) * (n_in - 1) / (n_out - 1)
    i0 = jnp.clip(jnp.floor(s).astype(jnp.int32), 0, n_in - 1)
    i1 = jnp.minimum(i0 + 1, n_in - 1)
    f = s - i0.astype(jnp.float32)
    return (jax.nn.one_hot(i0, n_in) * (1.0 - f)[:, None]
            + jax.nn.one_hot(i1, n_in) * f[:, None])


def shift_matrices(H, W):
    # (9, HW, HW): M[k, p, q] = 1 iff q = p + offset_k (k = ky*3 + kx, offsets
    # dy = ky-1, dx = kx-1), zero outside the image -> SAME-padded 3x3 conv.
    HW = H * W
    py, px = jnp.meshgrid(jnp.arange(H), jnp.arange(W), indexing="ij")
    py, px = py.reshape(-1), px.reshape(-1)
    mats = []
    for dy in (-1, 0, 1):
        for dx in (-1, 0, 1):
            qy, qx = py + dy, px + dx
            valid = ((qy >= 0) & (qy < H) & (qx >= 0) & (qx < W)).astype(jnp.float32)
            q = jnp.clip(qy, 0, H - 1) * W + jnp.clip(qx, 0, W - 1)
            mats.append(jax.nn.one_hot(q, HW, dtype=jnp.float32) * valid[:, None])
    return jnp.stack(mats, axis=0)


def fuse_reduce_forward(xh, xl, P):
    B, Chi, H, W = xh.shape
    C = P["s_fh"].shape[1]
    HW = H * W

    # NCHW -> channels-last glue + bilinear resize of xl (align_corners=True)
    xh_cl = jnp.transpose(xh, (0, 2, 3, 1)).reshape(B, HW, Chi)
    xl_r = jnp.einsum("oh,bchw,pw->bopc", P["Mh"], xl, P["Mw"]).reshape(B, HW, C)

    def rep(arr):
        n = arr.ndim
        return pl.BlockSpec(arr.shape, lambda b: (0,) * n)

    kern = functools.partial(_fused_kernel, HW=HW, C=C)
    out = pl.pallas_call(
        kern,
        out_shape=jax.ShapeDtypeStruct((B, HW, 2 * C), jnp.float32),
        grid=(B,),
        in_specs=[
            pl.BlockSpec((1, HW, Chi), lambda b: (b, 0, 0)),
            pl.BlockSpec((1, HW, C), lambda b: (b, 0, 0)),
            rep(P["W_fh_k"]), rep(P["s_fh"]), rep(P["b_fh"]),
            rep(P["T_eca"]),
            rep(P["W_bl_k"]), rep(P["s_bl"]), rep(P["b_bl"]),
            rep(P["SA_cat"]), rep(P["S2"]),
            rep(P["W_cat2x"]), rep(P["s_post"]), rep(P["b_post"]),
        ],
        out_specs=pl.BlockSpec((1, HW, 2 * C), lambda b: (b, 0, 0)),
        compiler_params=pltpu.CompilerParams(
            dimension_semantics=("parallel",)),   # batch across v7x's 2 TCs
    )(xh_cl, xl_r, P["W_fh_k"], P["s_fh"], P["b_fh"], P["T_eca"],
      P["W_bl_k"], P["s_bl"], P["b_bl"], P["SA_cat"], P["S2"],
      P["W_cat2x"], P["s_post"], P["b_post"])

    out1 = jnp.transpose(out[:, :, :C].reshape(B, H, W, C), (0, 3, 1, 2))
    out2 = jnp.transpose(out[:, :, C:].reshape(B, H, W, C), (0, 3, 1, 2))
    return out1, out2


def make_params(key, chi, c, cb, hl, wl, H, W):
    ks = jax.random.split(key, 11)
    HW = H * W

    def bn_params(k, n):
        k1, k2, k3, k4 = jax.random.split(k, 4)
        gamma = 1.0 + 0.1 * jax.random.normal(k1, (n,), jnp.float32)
        beta = 0.1 * jax.random.normal(k2, (n,), jnp.float32)
        mean = 0.1 * jax.random.normal(k3, (n,), jnp.float32)
        var = 1.0 + 0.1 * jax.random.uniform(k4, (n,), jnp.float32)
        return gamma, beta, mean, var

    def fold(bn_p, conv_bias):
        g, be, m, v = bn_p
        s = g / jnp.sqrt(v + EPS)
        return s[None, :], (be - m * s + conv_bias * s)[None, :]

    W_fh = 0.1 * jax.random.normal(ks[0], (chi, c), jnp.float32)        # (Cin, Cout)
    b_fh_conv = 0.1 * jax.random.normal(ks[1], (c,), jnp.float32)
    bn_fh = bn_params(ks[2], c)
    s_fh, b_fh = fold(bn_fh, b_fh_conv)

    w_td = 0.5 * jax.random.normal(ks[3], (3,), jnp.float32)            # ECA taps

    W_bl = 0.1 * jax.random.normal(ks[4], (c, cb), jnp.float32)
    b_bl_conv = 0.1 * jax.random.normal(ks[5], (cb,), jnp.float32)
    bn_bl = bn_params(ks[6], cb)
    s_bl, b_bl = fold(bn_bl, b_bl_conv)

    W_sa_torch = 0.3 * jax.random.normal(ks[7], (1, 2, 3, 3), jnp.float32)   # OIHW

    W_post_torch = 0.05 * jax.random.normal(ks[8], (c, c, 3, 3), jnp.float32)  # OIHW
    b_post_conv = 0.1 * jax.random.normal(ks[9], (c,), jnp.float32)
    bn_post = bn_params(ks[10], c)
    s_post, b_post = fold(bn_post, b_post_conv)

    # ---- kernel-ready derived tensors ----
    # ECA conv1d(k=3, pad=1, no bias) as a tridiagonal (C, C) tap matrix.
    T_eca = (w_td[0] * jnp.eye(c, k=1) + w_td[1] * jnp.eye(c)
             + w_td[2] * jnp.eye(c, k=-1)).astype(jnp.float32)

    M9 = shift_matrices(H, W)                                   # (9, HW, HW)
    w_sa = W_sa_torch[0].reshape(2, 9)
    SA_cat = jnp.concatenate(
        [jnp.einsum("k,kpq->pq", w_sa[0], M9),
         jnp.einsum("k,kpq->pq", w_sa[1], M9)], axis=1)          # (HW, 2HW)

    # block-diagonal shift matrices for the row-stacked (2 images) post conv
    S2 = jnp.zeros((9, 2 * HW, 2 * HW), jnp.float32)
    S2 = S2.at[:, :HW, :HW].set(M9).at[:, HW:, HW:].set(M9)

    # post 3x3 weights, tap-concatenated (Cin, 9*Cout); the "2*x" factor is
    # folded into the weights (conv bias is NOT doubled -> folded into b_post).
    W_cat2x = (2.0 * jnp.transpose(W_post_torch, (1, 2, 3, 0))
               .reshape(c, 9 * c)).astype(jnp.bfloat16)

    return dict(
        # torch-layout params (for the pure-JAX reference)
        W_fh=W_fh, b_fh_conv=b_fh_conv, bn_fh=bn_fh,
        w_td=w_td,
        W_bl=W_bl, b_bl_conv=b_bl_conv, bn_bl=bn_bl,
        W_sa_torch=W_sa_torch,
        W_post_torch=W_post_torch, b_post_conv=b_post_conv, bn_post=bn_post,
        # kernel-ready params
        W_fh_k=W_fh.astype(jnp.bfloat16), s_fh=s_fh, b_fh=b_fh,
        T_eca=T_eca,
        W_bl_k=W_bl.astype(jnp.bfloat16), s_bl=s_bl, b_bl=b_bl,
        SA_cat=SA_cat, S2=S2,
        W_cat2x=W_cat2x, s_post=s_post, b_post=b_post,
        Mh=interp_matrix(hl, H), Mw=interp_matrix(wl, W))


# ---------------------- pure-JAX reference (sanity check) ---------------------

def reference_forward(xh, xl, P):
    def bn(x, p):
        g, b, m, v = (t[None, :, None, None] for t in p)
        return (x - m) / jnp.sqrt(v + EPS) * g + b

    conv3 = lambda x, w: lax.conv_general_dilated(
        x, w, (1, 1), "SAME", dimension_numbers=("NCHW", "OIHW", "NCHW"))

    xh_f = jax.nn.relu(bn(jnp.einsum("bihw,io->bohw", xh, P["W_fh"])
                          + P["b_fh_conv"][None, :, None, None], P["bn_fh"]))
    p = jnp.mean(xh_f, axis=(2, 3))
    pp = jnp.pad(p, ((0, 0), (1, 1)))
    eca = P["w_td"][0] * pp[:, :-2] + P["w_td"][1] * pp[:, 1:-1] + P["w_td"][2] * pp[:, 2:]
    td = xh_f * jax.nn.sigmoid(eca)[:, :, None, None]
    xl_r = jnp.einsum("oh,bchw,pw->bcop", P["Mh"], xl, P["Mw"])
    z = xl_r * td
    u = jax.nn.relu(bn(jnp.einsum("bihw,io->bohw", z, P["W_bl"])
                       + P["b_bl_conv"][None, :, None, None], P["bn_bl"]))
    sa_in = jnp.concatenate([jnp.mean(u, axis=1, keepdims=True),
                             jnp.max(u, axis=1, keepdims=True)], axis=1)
    bw = jax.nn.sigmoid(conv3(sa_in, P["W_sa_torch"]))

    def post(x):
        y = conv3(x, P["W_post_torch"]) + P["b_post_conv"][None, :, None, None]
        return jax.nn.relu(bn(y, P["bn_post"]))

    return post(2 * z), post(2 * xh_f * bw)


# ----------------------------------- main --------------------------------------

if __name__ == "__main__":
    B, Chi, C, r = 2, 32, 64, 4
    Cb = C // r
    H = W = 8
    Hl = Wl = 4

    key = jax.random.PRNGKey(0)
    k1, k2, k3 = jax.random.split(key, 3)
    xh = jax.random.normal(k1, (B, Chi, H, W), jnp.float32)
    xl = jax.random.normal(k2, (B, C, Hl, Wl), jnp.float32)
    P = make_params(k3, Chi, C, Cb, Hl, Wl, H, W)

    out1, out2 = jax.jit(fuse_reduce_forward)(xh, xl, P)
    jax.block_until_ready((out1, out2))

    r1, r2 = reference_forward(xh, xl, P)
    assert out1.shape == (B, C, H, W) and out2.shape == (B, C, H, W)
    e1 = float(jnp.max(jnp.abs(out1 - r1)))
    e2 = float(jnp.max(jnp.abs(out2 - r2)))
    assert jnp.allclose(out1, r1, atol=5e-2, rtol=5e-2), e1
    assert jnp.allclose(out2, r2, atol=5e-2, rtol=5e-2), e2

    print("KERNEL_OK")
</pallas_src>

<mosaic_0001>
module attributes {stable_mosaic.version = 11 : i64} {
  func.func @_fused_kernel(%arg0: i32, %arg1: memref<1x64x32xf32, #tpu.memory_space<vmem>>, %arg2: memref<1x64x64xf32, #tpu.memory_space<vmem>>, %arg3: memref<32x64xbf16, #tpu.memory_space<vmem>>, %arg4: memref<1x64xf32, #tpu.memory_space<vmem>>, %arg5: memref<1x64xf32, #tpu.memory_space<vmem>>, %arg6: memref<64x64xf32, #tpu.memory_space<vmem>>, %arg7: memref<64x16xbf16, #tpu.memory_space<vmem>>, %arg8: memref<1x16xf32, #tpu.memory_space<vmem>>, %arg9: memref<1x16xf32, #tpu.memory_space<vmem>>, %arg10: memref<64x128xf32, #tpu.memory_space<vmem>>, %arg11: memref<9x128x128xf32, #tpu.memory_space<vmem>>, %arg12: memref<64x576xbf16, #tpu.memory_space<vmem>>, %arg13: memref<1x64xf32, #tpu.memory_space<vmem>>, %arg14: memref<1x64xf32, #tpu.memory_space<vmem>>, %arg15: memref<1x64x128xf32, #tpu.memory_space<vmem>>) attributes {dimension_semantics = [#tpu.dimension_semantics<parallel>], iteration_bounds = array<i64: 2>, scalar_prefetch = 0 : i64, scratch_operands = 0 : i64, tpu.core_type = #tpu.core_type<tc>, window_params = [{transform_indices = @transform_0, window_bounds = array<i64: 1, 64, 32>}, {transform_indices = @transform_1, window_bounds = array<i64: 1, 64, 64>}, {pipeline_mode = #tpu.pipeline_mode<synchronous>, transform_indices = @transform_2, window_bounds = array<i64: 32, 64>}, {pipeline_mode = #tpu.pipeline_mode<synchronous>, transform_indices = @transform_3, window_bounds = array<i64: 1, 64>}, {pipeline_mode = #tpu.pipeline_mode<synchronous>, transform_indices = @transform_4, window_bounds = array<i64: 1, 64>}, {pipeline_mode = #tpu.pipeline_mode<synchronous>, transform_indices = @transform_5, window_bounds = array<i64: 64, 64>}, {pipeline_mode = #tpu.pipeline_mode<synchronous>, transform_indices = @transform_6, window_bounds = array<i64: 64, 16>}, {pipeline_mode = #tpu.pipeline_mode<synchronous>, transform_indices = @transform_7, window_bounds = array<i64: 1, 16>}, {pipeline_mode = #tpu.pipeline_mode<synchronous>, transform_indices = @transform_8, window_bounds = array<i64: 1, 16>}, {pipeline_mode = #tpu.pipeline_mode<synchronous>, transform_indices = @transform_9, window_bounds = array<i64: 64, 128>}, {pipeline_mode = #tpu.pipeline_mode<synchronous>, transform_indices = @transform_10, window_bounds = array<i64: 9, 128, 128>}, {pipeline_mode = #tpu.pipeline_mode<synchronous>, transform_indices = @transform_11, window_bounds = array<i64: 64, 576>}, {pipeline_mode = #tpu.pipeline_mode<synchronous>, transform_indices = @transform_12, window_bounds = array<i64: 1, 64>}, {pipeline_mode = #tpu.pipeline_mode<synchronous>, transform_indices = @transform_13, window_bounds = array<i64: 1, 64>}, {transform_indices = @transform_14, window_bounds = array<i64: 1, 64, 128>}]} {
    %c0 = arith.constant 0 : index
    %c0_0 = arith.constant 0 : index
    %c0_1 = arith.constant 0 : index
    %0 = vector.load %arg1[%c0, %c0_0, %c0_1] : memref<1x64x32xf32, #tpu.memory_space<vmem>>, vector<1x64x32xf32>
    %1 = vector.shape_cast %0 : vector<1x64x32xf32> to vector<64x32xf32>
    %2 = arith.truncf %1 : vector<64x32xf32> to vector<64x32xbf16>
    %c0_2 = arith.constant 0 : index
    %c0_3 = arith.constant 0 : index
    %3 = vector.load %arg3[%c0_2, %c0_3] : memref<32x64xbf16, #tpu.memory_space<vmem>>, vector<32x64xbf16>
    %cst = arith.constant dense<0.000000e+00> : vector<64x64xf32>
    %4 = tpu.matmul %2, %3, %cst {dimension_numbers = #tpu.dot_dimension_numbers<[1], [0], [0], [1], [0, 0, 1, 1], [], []>} : vector<64x32xbf16>, vector<32x64xbf16>, vector<64x64xf32> -> vector<64x64xf32>
    %c0_4 = arith.constant 0 : index
    %c0_5 = arith.constant 0 : index
    %5 = vector.load %arg4[%c0_4, %c0_5] : memref<1x64xf32, #tpu.memory_space<vmem>>, vector<1x64xf32>
    %6 = vector.broadcast %5 : vector<1x64xf32> to vector<64x64xf32>
    %7 = arith.mulf %4, %6 : vector<64x64xf32>
    %c0_6 = arith.constant 0 : index
    %c0_7 = arith.constant 0 : index
    %8 = vector.load %arg5[%c0_6, %c0_7] : memref<1x64xf32, #tpu.memory_space<vmem>>, vector<1x64xf32>
    %9 = vector.broadcast %8 : vector<1x64xf32> to vector<64x64xf32>
    %10 = arith.addf %7, %9 : vector<64x64xf32>
    %cst_8 = arith.constant 0.000000e+00 : f32
    %11 = vector.broadcast %cst_8 : f32 to vector<64x64xf32>
    %12 = arith.maximumf %10, %11 : vector<64x64xf32>
    %cst_9 = arith.constant dense<0.000000e+00> : vector<64xf32>
    %13 = vector.multi_reduction <add>, %12, %cst_9 [0] : vector<64x64xf32> to vector<64xf32>
    %14 = vector.shape_cast %13 : vector<64xf32> to vector<1x64xf32>
    %cst_10 = arith.constant 6.400000e+01 : f32
    %15 = vector.broadcast %cst_10 : f32 to vector<1x64xf32>
    %16 = arith.divf %14, %15 : vector<1x64xf32>
    %17 = vector.shape_cast %16 : vector<1x64xf32> to vector<1x64xf32>
    %18 = vector.broadcast %17 : vector<1x64xf32> to vector<8x64xf32>
    %c0_11 = arith.constant 0 : index
    %c0_12 = arith.constant 0 : index
    %19 = vector.load %arg6[%c0_11, %c0_12] : memref<64x64xf32, #tpu.memory_space<vmem>>, vector<64x64xf32>
    %cst_13 = arith.constant dense<0.000000e+00> : vector<8x64xf32>
    %20 = tpu.matmul %18, %19, %cst_13 {dimension_numbers = #tpu.dot_dimension_numbers<[1], [0], [0], [1], [0, 0, 1, 1], [], []>} : vector<8x64xf32>, vector<64x64xf32>, vector<8x64xf32> -> vector<8x64xf32>
    %21 = arith.negf %20 : vector<8x64xf32>
    %22 = math.exp %21 : vector<8x64xf32>
    %cst_14 = arith.constant 1.000000e+00 : f32
    %23 = vector.broadcast %cst_14 : f32 to vector<8x64xf32>
    %24 = arith.addf %23, %22 : vector<8x64xf32>
    %25 = arith.divf %23, %24 : vector<8x64xf32>
    %26 = vector.extract_strided_slice %25 {offsets = [0, 0], sizes = [1, 64], strides = [1, 1]} : vector<8x64xf32> to vector<1x64xf32>
    %27 = vector.broadcast %26 : vector<1x64xf32> to vector<64x64xf32>
    %28 = arith.mulf %12, %27 : vector<64x64xf32>
    %c0_15 = arith.constant 0 : index
    %c0_16 = arith.constant 0 : index
    %c0_17 = arith.constant 0 : index
    %29 = vector.load %arg2[%c0_15, %c0_16, %c0_17] : memref<1x64x64xf32, #tpu.memory_space<vmem>>, vector<1x64x64xf32>
    %30 = vector.shape_cast %29 : vector<1x64x64xf32> to vector<64x64xf32>
    %31 = arith.mulf %30, %28 : vector<64x64xf32>
    %32 = arith.truncf %31 : vector<64x64xf32> to vector<64x64xbf16>
    %c0_18 = arith.constant 0 : index
    %c0_19 = arith.constant 0 : index
    %33 = vector.load %arg7[%c0_18, %c0_19] : memref<64x16xbf16, #tpu.memory_space<vmem>>, vector<64x16xbf16>
    %cst_20 = arith.constant dense<0.000000e+00> : vector<64x16xf32>
    %34 = tpu.matmul %32, %33, %cst_20 {dimension_numbers = #tpu.dot_dimension_numbers<[1], [0], [0], [1], [0, 0, 1, 1], [], []>} : vector<64x64xbf16>, vector<64x16xbf16>, vector<64x16xf32> -> vector<64x16xf32>
    %c0_21 = arith.constant 0 : index
    %c0_22 = arith.constant 0 : index
    %35 = vector.load %arg8[%c0_21, %c0_22] : memref<1x16xf32, #tpu.memory_space<vmem>>, vector<1x16xf32>
    %36 = vector.broadcast %35 : vector<1x16xf32> to vector<64x16xf32>
    %37 = arith.mulf %34, %36 : vector<64x16xf32>
    %c0_23 = arith.constant 0 : index
    %c0_24 = arith.constant 0 : index
    %38 = vector.load %arg9[%c0_23, %c0_24] : memref<1x16xf32, #tpu.memory_space<vmem>>, vector<1x16xf32>
    %39 = vector.broadcast %38 : vector<1x16xf32> to vector<64x16xf32>
    %40 = arith.addf %37, %39 : vector<64x16xf32>
    %cst_25 = arith.constant 0.000000e+00 : f32
    %41 = vector.broadcast %cst_25 : f32 to vector<64x16xf32>
    %42 = arith.maximumf %40, %41 : vector<64x16xf32>
    %cst_26 = arith.constant dense<0.000000e+00> : vector<64xf32>
    %43 = vector.multi_reduction <add>, %42, %cst_26 [1] : vector<64x16xf32> to vector<64xf32>
    %44 = vector.shape_cast %43 : vector<64xf32> to vector<64x1xf32>
    %cst_27 = arith.constant 1.600000e+01 : f32
    %45 = vector.broadcast %cst_27 : f32 to vector<64x1xf32>
    %46 = arith.divf %44, %45 : vector<64x1xf32>
    %cst_28 = arith.constant dense<0xFF800000> : vector<64xf32>
    %47 = vector.multi_reduction <maximumf>, %42, %cst_28 [1] : vector<64x16xf32> to vector<64xf32>
    %48 = vector.shape_cast %47 : vector<64xf32> to vector<64x1xf32>
    %49 = tpu.concatenate %46, %48 in 0 : vector<64x1xf32>, vector<64x1xf32> -> vector<128x1xf32>
    %50 = vector.shape_cast %49 : vector<128x1xf32> to vector<128x1xf32>
    %51 = vector.broadcast %50 : vector<128x1xf32> to vector<128x64xf32>
    %c0_29 = arith.constant 0 : index
    %c0_30 = arith.constant 0 : index
    %52 = vector.load %arg10[%c0_29, %c0_30] : memref<64x128xf32, #tpu.memory_space<vmem>>, vector<64x128xf32>
    %cst_31 = arith.constant dense<0.000000e+00> : vector<64x64xf32>
    %53 = tpu.matmul %52, %51, %cst_31 {dimension_numbers = #tpu.dot_dimension_numbers<[1], [0], [0], [1], [0, 0, 1, 1], [], []>} : vector<64x128xf32>, vector<128x64xf32>, vector<64x64xf32> -> vector<64x64xf32>
    %54 = arith.negf %53 : vector<64x64xf32>
    %55 = math.exp %54 : vector<64x64xf32>
    %cst_32 = arith.constant 1.000000e+00 : f32
    %56 = vector.broadcast %cst_32 : f32 to vector<64x64xf32>
    %57 = arith.addf %56, %55 : vector<64x64xf32>
    %58 = arith.divf %56, %57 : vector<64x64xf32>
    %59 = arith.mulf %12, %58 : vector<64x64xf32>
    %60 = tpu.concatenate %31, %59 in 0 : vector<64x64xf32>, vector<64x64xf32> -> vector<128x64xf32>
    %61 = arith.truncf %60 : vector<128x64xf32> to vector<128x64xbf16>
    %c0_33 = arith.constant 0 : index
    %c0_34 = arith.constant 0 : index
    %62 = vector.load %arg12[%c0_33, %c0_34] : memref<64x576xbf16, #tpu.memory_space<vmem>>, vector<64x576xbf16>
    %cst_35 = arith.constant dense<0.000000e+00> : vector<128x576xf32>
    %63 = tpu.matmul %61, %62, %cst_35 {dimension_numbers = #tpu.dot_dimension_numbers<[1], [0], [0], [1], [0, 0, 1, 1], [], []>} : vector<128x64xbf16>, vector<64x576xbf16>, vector<128x576xf32> -> vector<128x576xf32>
    %cst_36 = arith.constant 0.000000e+00 : f32
    %64 = vector.broadcast %cst_36 : f32 to vector<128x64xf32>
    %c0_37 = arith.constant 0 : index
    %c0_38 = arith.constant 0 : index
    %c0_39 = arith.constant 0 : index
    %65 = vector.load %arg11[%c0_37, %c0_38, %c0_39] : memref<9x128x128xf32, #tpu.memory_space<vmem>>, vector<1x128x128xf32>
    %66 = vector.shape_cast %65 : vector<1x128x128xf32> to vector<128x128xf32>
    %67 = vector.extract_strided_slice %63 {offsets = [0, 0], sizes = [128, 64], strides = [1, 1]} : vector<128x576xf32> to vector<128x64xf32>
    %cst_40 = arith.constant dense<0.000000e+00> : vector<128x64xf32>
    %68 = tpu.matmul %66, %67, %cst_40 {dimension_numbers = #tpu.dot_dimension_numbers<[1], [0], [0], [1], [0, 0, 1, 1], [], []>} : vector<128x128xf32>, vector<128x64xf32>, vector<128x64xf32> -> vector<128x64xf32>
    %69 = arith.addf %64, %68 : vector<128x64xf32>
    %c1 = arith.constant 1 : index
    %c0_41 = arith.constant 0 : index
    %c0_42 = arith.constant 0 : index
    %70 = vector.load %arg11[%c1, %c0_41, %c0_42] : memref<9x128x128xf32, #tpu.memory_space<vmem>>, vector<1x128x128xf32>
    %71 = vector.shape_cast %70 : vector<1x128x128xf32> to vector<128x128xf32>
    %72 = vector.extract_strided_slice %63 {offsets = [0, 64], sizes = [128, 64], strides = [1, 1]} : vector<128x576xf32> to vector<128x64xf32>
    %cst_43 = arith.constant dense<0.000000e+00> : vector<128x64xf32>
    %73 = tpu.matmul %71, %72, %cst_43 {dimension_numbers = #tpu.dot_dimension_numbers<[1], [0], [0], [1], [0, 0, 1, 1], [], []>} : vector<128x128xf32>, vector<128x64xf32>, vector<128x64xf32> -> vector<128x64xf32>
    %74 = arith.addf %69, %73 : vector<128x64xf32>
    %c2 = arith.constant 2 : index
    %c0_44 = arith.constant 0 : index
    %c0_45 = arith.constant 0 : index
    %75 = vector.load %arg11[%c2, %c0_44, %c0_45] : memref<9x128x128xf32, #tpu.memory_space<vmem>>, vector<1x128x128xf32>
    %76 = vector.shape_cast %75 : vector<1x128x128xf32> to vector<128x128xf32>
    %77 = vector.extract_strided_slice %63 {offsets = [0, 128], sizes = [128, 64], strides = [1, 1]} : vector<128x576xf32> to vector<128x64xf32>
    %cst_46 = arith.constant dense<0.000000e+00> : vector<128x64xf32>
    %78 = tpu.matmul %76, %77, %cst_46 {dimension_numbers = #tpu.dot_dimension_numbers<[1], [0], [0], [1], [0, 0, 1, 1], [], []>} : vector<128x128xf32>, vector<128x64xf32>, vector<128x64xf32> -> vector<128x64xf32>
    %79 = arith.addf %74, %78 : vector<128x64xf32>
    %c3 = arith.constant 3 : index
    %c0_47 = arith.constant 0 : index
    %c0_48 = arith.constant 0 : index
    %80 = vector.load %arg11[%c3, %c0_47, %c0_48] : memref<9x128x128xf32, #tpu.memory_space<vmem>>, vector<1x128x128xf32>
    %81 = vector.shape_cast %80 : vector<1x128x128xf32> to vector<128x128xf32>
    %82 = vector.extract_strided_slice %63 {offsets = [0, 192], sizes = [128, 64], strides = [1, 1]} : vector<128x576xf32> to vector<128x64xf32>
    %cst_49 = arith.constant dense<0.000000e+00> : vector<128x64xf32>
    %83 = tpu.matmul %81, %82, %cst_49 {dimension_numbers = #tpu.dot_dimension_numbers<[1], [0], [0], [1], [0, 0, 1, 1], [], []>} : vector<128x128xf32>, vector<128x64xf32>, vector<128x64xf32> -> vector<128x64xf32>
    %84 = arith.addf %79, %83 : vector<128x64xf32>
    %c4 = arith.constant 4 : index
    %c0_50 = arith.constant 0 : index
    %c0_51 = arith.constant 0 : index
    %85 = vector.load %arg11[%c4, %c0_50, %c0_51] : memref<9x128x128xf32, #tpu.memory_space<vmem>>, vector<1x128x128xf32>
    %86 = vector.shape_cast %85 : vector<1x128x128xf32> to vector<128x128xf32>
    %87 = vector.extract_strided_slice %63 {offsets = [0, 256], sizes = [128, 64], strides = [1, 1]} : vector<128x576xf32> to vector<128x64xf32>
    %cst_52 = arith.constant dense<0.000000e+00> : vector<128x64xf32>
    %88 = tpu.matmul %86, %87, %cst_52 {dimension_numbers = #tpu.dot_dimension_numbers<[1], [0], [0], [1], [0, 0, 1, 1], [], []>} : vector<128x128xf32>, vector<128x64xf32>, vector<128x64xf32> -> vector<128x64xf32>
    %89 = arith.addf %84, %88 : vector<128x64xf32>
    %c5 = arith.constant 5 : index
    %c0_53 = arith.constant 0 : index
    %c0_54 = arith.constant 0 : index
    %90 = vector.load %arg11[%c5, %c0_53, %c0_54] : memref<9x128x128xf32, #tpu.memory_space<vmem>>, vector<1x128x128xf32>
    %91 = vector.shape_cast %90 : vector<1x128x128xf32> to vector<128x128xf32>
    %92 = vector.extract_strided_slice %63 {offsets = [0, 320], sizes = [128, 64], strides = [1, 1]} : vector<128x576xf32> to vector<128x64xf32>
    %cst_55 = arith.constant dense<0.000000e+00> : vector<128x64xf32>
    %93 = tpu.matmul %91, %92, %cst_55 {dimension_numbers = #tpu.dot_dimension_numbers<[1], [0], [0], [1], [0, 0, 1, 1], [], []>} : vector<128x128xf32>, vector<128x64xf32>, vector<128x64xf32> -> vector<128x64xf32>
    %94 = arith.addf %89, %93 : vector<128x64xf32>
    %c6 = arith.constant 6 : index
    %c0_56 = arith.constant 0 : index
    %c0_57 = arith.constant 0 : index
    %95 = vector.load %arg11[%c6, %c0_56, %c0_57] : memref<9x128x128xf32, #tpu.memory_space<vmem>>, vector<1x128x128xf32>
    %96 = vector.shape_cast %95 : vector<1x128x128xf32> to vector<128x128xf32>
    %97 = vector.extract_strided_slice %63 {offsets = [0, 384], sizes = [128, 64], strides = [1, 1]} : vector<128x576xf32> to vector<128x64xf32>
    %cst_58 = arith.constant dense<0.000000e+00> : vector<128x64xf32>
    %98 = tpu.matmul %96, %97, %cst_58 {dimension_numbers = #tpu.dot_dimension_numbers<[1], [0], [0], [1], [0, 0, 1, 1], [], []>} : vector<128x128xf32>, vector<128x64xf32>, vector<128x64xf32> -> vector<128x64xf32>
    %99 = arith.addf %94, %98 : vector<128x64xf32>
    %c7 = arith.constant 7 : index
    %c0_59 = arith.constant 0 : index
    %c0_60 = arith.constant 0 : index
    %100 = vector.load %arg11[%c7, %c0_59, %c0_60] : memref<9x128x128xf32, #tpu.memory_space<vmem>>, vector<1x128x128xf32>
    %101 = vector.shape_cast %100 : vector<1x128x128xf32> to vector<128x128xf32>
    %102 = vector.extract_strided_slice %63 {offsets = [0, 448], sizes = [128, 64], strides = [1, 1]} : vector<128x576xf32> to vector<128x64xf32>
    %cst_61 = arith.constant dense<0.000000e+00> : vector<128x64xf32>
    %103 = tpu.matmul %101, %102, %cst_61 {dimension_numbers = #tpu.dot_dimension_numbers<[1], [0], [0], [1], [0, 0, 1, 1], [], []>} : vector<128x128xf32>, vector<128x64xf32>, vector<128x64xf32> -> vector<128x64xf32>
    %104 = arith.addf %99, %103 : vector<128x64xf32>
    %c8 = arith.constant 8 : index
    %c0_62 = arith.constant 0 : index
    %c0_63 = arith.constant 0 : index
    %105 = vector.load %arg11[%c8, %c0_62, %c0_63] : memref<9x128x128xf32, #tpu.memory_space<vmem>>, vector<1x128x128xf32>
    %106 = vector.shape_cast %105 : vector<1x128x128xf32> to vector<128x128xf32>
    %107 = vector.extract_strided_slice %63 {offsets = [0, 512], sizes = [128, 64], strides = [1, 1]} : vector<128x576xf32> to vector<128x64xf32>
    %cst_64 = arith.constant dense<0.000000e+00> : vector<128x64xf32>
    %108 = tpu.matmul %106, %107, %cst_64 {dimension_numbers = #tpu.dot_dimension_numbers<[1], [0], [0], [1], [0, 0, 1, 1], [], []>} : vector<128x128xf32>, vector<128x64xf32>, vector<128x64xf32> -> vector<128x64xf32>
    %109 = arith.addf %104, %108 : vector<128x64xf32>
    %c0_65 = arith.constant 0 : index
    %c0_66 = arith.constant 0 : index
    %110 = vector.load %arg13[%c0_65, %c0_66] : memref<1x64xf32, #tpu.memory_space<vmem>>, vector<1x64xf32>
    %111 = vector.broadcast %110 : vector<1x64xf32> to vector<128x64xf32>
    %112 = arith.mulf %109, %111 : vector<128x64xf32>
    %c0_67 = arith.constant 0 : index
    %c0_68 = arith.constant 0 : index
    %113 = vector.load %arg14[%c0_67, %c0_68] : memref<1x64xf32, #tpu.memory_space<vmem>>, vector<1x64xf32>
    %114 = vector.broadcast %113 : vector<1x64xf32> to vector<128x64xf32>
    %115 = arith.addf %112, %114 : vector<128x64xf32>
    %cst_69 = arith.constant 0.000000e+00 : f32
    %116 = vector.broadcast %cst_69 : f32 to vector<128x64xf32>
    %117 = arith.maximumf %115, %116 : vector<128x64xf32>
    %118 = vector.extract_strided_slice %117 {offsets = [0, 0], sizes = [64, 64], strides = [1, 1]} : vector<128x64xf32> to vector<64x64xf32>
    %119 = vector.extract_strided_slice %117 {offsets = [64, 0], sizes = [64, 64], strides = [1, 1]} : vector<128x64xf32> to vector<64x64xf32>
    %120 = tpu.concatenate %118, %119 in 1 : vector<64x64xf32>, vector<64x64xf32> -> vector<64x128xf32>
    %c0_70 = arith.constant 0 : index
    %c0_71 = arith.constant 0 : index
    %c0_72 = arith.constant 0 : index
    %121 = vector.load %arg15[%c0_70, %c0_71, %c0_72] : memref<1x64x128xf32, #tpu.memory_space<vmem>>, vector<1x64x128xf32>
    %122 = vector.shape_cast %121 : vector<1x64x128xf32> to vector<64x128xf32>
    %123 = vector.shape_cast %120 : vector<64x128xf32> to vector<1x64x128xf32>
    tpu.vector_store %arg15[%c0_70, %c0_71, %c0_72], %123 {strides = array<i32>} : memref<1x64x128xf32, #tpu.memory_space<vmem>>, vector<1x64x128xf32>,
    return
  }
  func.func @transform_0(%arg0: i32) -> (i32, i32, i32) {
    %c0_i32 = arith.constant 0 : i32
    %c0_i32_0 = arith.constant 0 : i32
    %c0_i32_1 = arith.constant 0 : i32
    return %arg0, %c0_i32, %c0_i32_0 : i32, i32, i32
  }
  func.func @transform_1(%arg0: i32) -> (i32, i32, i32) {
    %c0_i32 = arith.constant 0 : i32
    %c0_i32_0 = arith.constant 0 : i32
    %c0_i32_1 = arith.constant 0 : i32
    return %arg0, %c0_i32, %c0_i32_0 : i32, i32, i32
  }
  func.func @transform_2(%arg0: i32) -> (i32, i32) {
    %c0_i32 = arith.constant 0 : i32
    %c0_i32_0 = arith.constant 0 : i32
    %c0_i32_1 = arith.constant 0 : i32
    return %c0_i32, %c0_i32_0 : i32, i32
  }
  func.func @transform_3(%arg0: i32) -> (i32, i32) {
    %c0_i32 = arith.constant 0 : i32
    %c0_i32_0 = arith.constant 0 : i32
    %c0_i32_1 = arith.constant 0 : i32
    return %c0_i32, %c0_i32_0 : i32, i32
  }
  func.func @transform_4(%arg0: i32) -> (i32, i32) {
    %c0_i32 = arith.constant 0 : i32
    %c0_i32_0 = arith.constant 0 : i32
    %c0_i32_1 = arith.constant 0 : i32
    return %c0_i32, %c0_i32_0 : i32, i32
  }
  func.func @transform_5(%arg0: i32) -> (i32, i32) {
    %c0_i32 = arith.constant 0 : i32
    %c0_i32_0 = arith.constant 0 : i32
    %c0_i32_1 = arith.constant 0 : i32
    return %c0_i32, %c0_i32_0 : i32, i32
  }
  func.func @transform_6(%arg0: i32) -> (i32, i32) {
    %c0_i32 = arith.constant 0 : i32
    %c0_i32_0 = arith.constant 0 : i32
    %c0_i32_1 = arith.constant 0 : i32
    return %c0_i32, %c0_i32_0 : i32, i32
  }
  func.func @transform_7(%arg0: i32) -> (i32, i32) {
    %c0_i32 = arith.constant 0 : i32
    %c0_i32_0 = arith.constant 0 : i32
    %c0_i32_1 = arith.constant 0 : i32
    return %c0_i32, %c0_i32_0 : i32, i32
  }
  func.func @transform_8(%arg0: i32) -> (i32, i32) {
    %c0_i32 = arith.constant 0 : i32
    %c0_i32_0 = arith.constant 0 : i32
    %c0_i32_1 = arith.constant 0 : i32
    return %c0_i32, %c0_i32_0 : i32, i32
  }
  func.func @transform_9(%arg0: i32) -> (i32, i32) {
    %c0_i32 = arith.constant 0 : i32
    %c0_i32_0 = arith.constant 0 : i32
    %c0_i32_1 = arith.constant 0 : i32
    return %c0_i32, %c0_i32_0 : i32, i32
  }
  func.func @transform_10(%arg0: i32) -> (i32, i32, i32) {
    %c0_i32 = arith.constant 0 : i32
    %c0_i32_0 = arith.constant 0 : i32
    %c0_i32_1 = arith.constant 0 : i32
    %c0_i32_2 = arith.constant 0 : i32
    return %c0_i32, %c0_i32_0, %c0_i32_1 : i32, i32, i32
  }
  func.func @transform_11(%arg0: i32) -> (i32, i32) {
    %c0_i32 = arith.constant 0 : i32
    %c0_i32_0 = arith.constant 0 : i32
    %c0_i32_1 = arith.constant 0 : i32
    return %c0_i32, %c0_i32_0 : i32, i32
  }
  func.func @transform_12(%arg0: i32) -> (i32, i32) {
    %c0_i32 = arith.constant 0 : i32
    %c0_i32_0 = arith.constant 0 : i32
    %c0_i32_1 = arith.constant 0 : i32
    return %c0_i32, %c0_i32_0 : i32, i32
  }
  func.func @transform_13(%arg0: i32) -> (i32, i32) {
    %c0_i32 = arith.constant 0 : i32
    %c0_i32_0 = arith.constant 0 : i32
    %c0_i32_1 = arith.constant 0 : i32
    return %c0_i32, %c0_i32_0 : i32, i32
  }
  func.func @transform_14(%arg0: i32) -> (i32, i32, i32) {
    %c0_i32 = arith.constant 0 : i32
    %c0_i32_0 = arith.constant 0 : i32
    %c0_i32_1 = arith.constant 0 : i32
    return %arg0, %c0_i32, %c0_i32_0 : i32, i32, i32
  }
}

</mosaic_0001>

<llo_original>
// kernel: fuse_reduce_forward.1
$region0: #{fuse_reduce_forward.1}
  #allocation0 [shape = 'u32[]', space=smem, size = 0x4, offset = 0x4, fixed_abs, tag = 'smem constant byte address 0x4 - core index']
  #allocation1 [shape = 'u32[72,128]{1,0:T(1,128)}', space=vmem, size = 0x9000, scoped, tag = 'internal scratch']
  %s0 = inlined_call_operand.hbm [shape: f32[2,64,32], index: 0, kind: input, shape index: {}]
  %s1 = inlined_call_operand.vmem [shape: f32[2,64,64], index: 1, kind: input, shape index: {}]
  %s2 = inlined_call_operand.vmem [shape: bf16[32,64], index: 2, kind: input, shape index: {}]
  %s3 = inlined_call_operand.vmem [shape: f32[1,64], index: 3, kind: input, shape index: {}]
  %s4 = inlined_call_operand.vmem [shape: f32[1,64], index: 4, kind: input, shape index: {}]
  %s5 = inlined_call_operand.vmem [shape: f32[64,64], index: 5, kind: input, shape index: {}]
  %s6 = inlined_call_operand.vmem [shape: bf16[64,16], index: 6, kind: input, shape index: {}]
  %s7 = inlined_call_operand.vmem [shape: f32[1,16], index: 7, kind: input, shape index: {}]
  %s8 = inlined_call_operand.vmem [shape: f32[1,16], index: 8, kind: input, shape index: {}]
  %s9 = inlined_call_operand.hbm [shape: f32[64,128], index: 9, kind: input, shape index: {}]
  %s10 = inlined_call_operand.hbm [shape: f32[9,128,128], index: 10, kind: input, shape index: {}]
  %s11 = inlined_call_operand.vmem [shape: bf16[64,576], index: 11, kind: input, shape index: {}]
  %s12 = inlined_call_operand.vmem [shape: f32[1,64], index: 12, kind: input, shape index: {}]
  %s13 = inlined_call_operand.vmem [shape: f32[1,64], index: 13, kind: input, shape index: {}]
  %s14 = inlined_call_operand.vmem [shape: f32[2,64,128], index: 14, kind: output, shape index: {}]
  %s15 = sld [smem:[#allocation0]]
  $region101: #{fuse_reduce_forward.1} parent=0
    _
  %s17 = ssub.s32 1, %s15
  %s18 = scalar_select 0, %s17, %s15
  $region1: #{fuse_reduce_forward.1} parent=0
    #allocation2 [shape = 'u8[65536]{0}', space=vmem, size = 0x10000, scoped, tag = 'input window, operand 0']
    #allocation3 [shape = 's32[2]{0}', space=sflag, size = 0x8, scoped, tag = 'scoped memory for fuse_reduce_forward.1']
    #allocation4 [shape = 'u8[32768]{0}', space=vmem, size = 0x8000, scoped, tag = 'input window, operand 9, single buffered']
    #allocation5 [shape = 's32[1]{0}', space=sflag, size = 0x4, scoped, tag = 'scoped memory for fuse_reduce_forward.1']
    #allocation6 [shape = 'u8[589824]{0}', space=vmem, size = 0x90000, scoped, tag = 'input window, operand 10, single buffered']
    %19 = vsyncpa [#allocation3], 0
    %s20 = scalar_lea.sflag [#allocation3], 1
    %21 = vsyncpa %s20, 0
    %22 = vsyncpa [#allocation5], 0
    loop: start=0, step=1, limit=4
    $region2: #{fuse_reduce_forward.1} parent=1 // loop_pre_header
      _
    $region3: #{fuse_reduce_forward.1} parent=1 // loop_header
      %s24 = sphi 0, %s28
      %p25 = scmp.ge.s32.totalorder %s24, 4
      %s34 = sphi 0, %s36
      %s37 = sphi 0, %s34
      %s38 = sphi 0, %s37
      %s54 = sphi 0, %s38
      %s60 = sphi 0, %s62
      %s63 = sphi 0, %s60
      %s64 = sphi 0, %s63
      %s80 = sphi 0, %s64
      %s84 = sphi 0, %s84
      %s86 = sphi 0, %s84
      %s87 = sphi 0, %s86
      %s101 = sphi 0, %s87
      %s105 = sphi 0, %s105
      %s107 = sphi 0, %s105
      %s108 = sphi 0, %s107
      %s122 = sphi 0, %s108
      %s126 = sphi 0, %s126
      %s128 = sphi 0, %s126
      %s129 = sphi 0, %s128
      %s143 = sphi 0, %s129
      %s147 = sphi 0, %s147
      %s149 = sphi 0, %s147
      %s150 = sphi 0, %s149
      %s164 = sphi 0, %s150
      %s168 = sphi 0, %s168
      %s170 = sphi 0, %s168
      %s171 = sphi 0, %s170
      %s185 = sphi 0, %s171
      %s189 = sphi 0, %s189
      %s191 = sphi 0, %s189
      %s192 = sphi 0, %s191
      %s206 = sphi 0, %s192
      %s210 = sphi 0, %s210
      %s212 = sphi 0, %s210
      %s213 = sphi 0, %s212
      %s227 = sphi 0, %s213
      %s231 = sphi 0, %s231
      %s233 = sphi 0, %s231
      %s234 = sphi 0, %s233
      %s248 = sphi 0, %s234
      %s252 = sphi 0, %s252
      %s254 = sphi 0, %s252
      %s255 = sphi 0, %s254
      %s269 = sphi 0, %s255
      %s273 = sphi 0, %s273
      %s275 = sphi 0, %s273
      %s276 = sphi 0, %s275
      %s290 = sphi 0, %s276
      %s294 = sphi 0, %s294
      %s296 = sphi 0, %s294
      %s297 = sphi 0, %s296
      %s311 = sphi 0, %s297
      %s315 = sphi 0, %s315
      %s317 = sphi 0, %s315
      %s318 = sphi 0, %s317
      %s332 = sphi 0, %s318
      %s338 = sphi 0, %s340
      %s341 = sphi 0, %s338
      %s342 = sphi 0, %s341
      %s358 = sphi 0, %s342
    $region4: #{fuse_reduce_forward.1} parent=1 // loop_header_branch
      %27 = sbr.rel (%p25) target = $region8
    $region5: #{fuse_reduce_forward.1} parent=1 // loop_body
      %s29 = ssub.s32 %s24, 1
      %s30 = ssub.s32 %s24, 2
      %s31 = sadd.s32 %s24, 1
      %s32 = ssub.s32 %s24, %s31
      %p33 = scmp.eq.s32.totalorder %s32, 0
      %s35 = sadd.s32 %s34, 1
      %s36 = scalar_select %p33, %s34, %s35
      %p39 = pneg %p33
      %p40 = scmp.eq.s32.totalorder %s24, 1
      %p41 = por %p39, %p40
      %p42 = scmp.ne.s32.totalorder %s34, %s37
      %p43 = scmp.eq.s32.totalorder %s24, 0
      %p44 = por %p42, %p43
      %p45 = scmp.ne.s32.totalorder %s34, %s37
      %p46 = scmp.eq.s32.totalorder %s29, 1
      %p47 = por %p45, %p46
      %p48 = scmp.ne.s32.totalorder %s37, %s38
      %p49 = scmp.eq.s32.totalorder %s29, 0
      %p50 = por %p48, %p49
      %p51 = scmp.ne.s32.totalorder %s37, %s38
      %p52 = scmp.eq.s32.totalorder %s30, 1
      %p53 = por %p51, %p52
      %p55 = scmp.ne.s32.totalorder %s38, %s54
      %p56 = scmp.eq.s32.totalorder %s30, 0
      %p57 = por %p55, %p56
      %s58 = ssub.s32 %s24, %s31
      %p59 = scmp.eq.s32.totalorder %s58, 0
      %s61 = sadd.s32 %s60, 1
      %s62 = scalar_select %p59, %s60, %s61
      %p65 = pneg %p59
      %p66 = scmp.eq.s32.totalorder %s24, 1
      %p67 = por %p65, %p66
      %p68 = scmp.ne.s32.totalorder %s60, %s63
      %p69 = scmp.eq.s32.totalorder %s24, 0
      %p70 = por %p68, %p69
      %p71 = scmp.ne.s32.totalorder %s60, %s63
      %p72 = scmp.eq.s32.totalorder %s29, 1
      %p73 = por %p71, %p72
      %p74 = scmp.ne.s32.totalorder %s63, %s64
      %p75 = scmp.eq.s32.totalorder %s29, 0
      %p76 = por %p74, %p75
      %p77 = scmp.ne.s32.totalorder %s63, %s64
      %p78 = scmp.eq.s32.totalorder %s30, 1
      %p79 = por %p77, %p78
      %p81 = scmp.ne.s32.totalorder %s64, %s80
      %p82 = scmp.eq.s32.totalorder %s30, 0
      %p83 = por %p81, %p82
      %s85 = sadd.s32 %s84, 1
      %p88 = scmp.eq.s32.totalorder %s24, 1
      %p89 = scmp.ne.s32.totalorder %s84, %s86
      %p90 = scmp.eq.s32.totalorder %s24, 0
      %p91 = por %p89, %p90
      %p92 = scmp.ne.s32.totalorder %s84, %s86
      %p93 = scmp.eq.s32.totalorder %s29, 1
      %p94 = por %p92, %p93
      %p95 = scmp.ne.s32.totalorder %s86, %s87
      %p96 = scmp.eq.s32.totalorder %s29, 0
      %p97 = por %p95, %p96
      %p98 = scmp.ne.s32.totalorder %s86, %s87
      %p99 = scmp.eq.s32.totalorder %s30, 1
      %p100 = por %p98, %p99
      %p102 = scmp.ne.s32.totalorder %s87, %s101
      %p103 = scmp.eq.s32.totalorder %s30, 0
      %p104 = por %p102, %p103
      %s106 = sadd.s32 %s105, 1
      %p109 = scmp.eq.s32.totalorder %s24, 1
      %p110 = scmp.ne.s32.totalorder %s105, %s107
      %p111 = scmp.eq.s32.totalorder %s24, 0
      %p112 = por %p110, %p111
      %p113 = scmp.ne.s32.totalorder %s105, %s107
      %p114 = scmp.eq.s32.totalorder %s29, 1
      %p115 = por %p113, %p114
      %p116 = scmp.ne.s32.totalorder %s107, %s108
      %p117 = scmp.eq.s32.totalorder %s29, 0
      %p118 = por %p116, %p117
      %p119 = scmp.ne.s32.totalorder %s107, %s108
      %p120 = scmp.eq.s32.totalorder %s30, 1
      %p121 = por %p119, %p120
      %p123 = scmp.ne.s32.totalorder %s108, %s122
      %p124 = scmp.eq.s32.totalorder %s30, 0
      %p125 = por %p123, %p124
      %s127 = sadd.s32 %s126, 1
      %p130 = scmp.eq.s32.totalorder %s24, 1
      %p131 = scmp.ne.s32.totalorder %s126, %s128
      %p132 = scmp.eq.s32.totalorder %s24, 0
      %p133 = por %p131, %p132
      %p134 = scmp.ne.s32.totalorder %s126, %s128
      %p135 = scmp.eq.s32.totalorder %s29, 1
      %p136 = por %p134, %p135
      %p137 = scmp.ne.s32.totalorder %s128, %s129
      %p138 = scmp.eq.s32.totalorder %s29, 0
      %p139 = por %p137, %p138
      %p140 = scmp.ne.s32.totalorder %s128, %s129
      %p141 = scmp.eq.s32.totalorder %s30, 1
      %p142 = por %p140, %p141
      %p144 = scmp.ne.s32.totalorder %s129, %s143
      %p145 = scmp.eq.s32.totalorder %s30, 0
      %p146 = por %p144, %p145
      %s148 = sadd.s32 %s147, 1
      %p151 = scmp.eq.s32.totalorder %s24, 1
      %p152 = scmp.ne.s32.totalorder %s147, %s149
      %p153 = scmp.eq.s32.totalorder %s24, 0
      %p154 = por %p152, %p153
      %p155 = scmp.ne.s32.totalorder %s147, %s149
      %p156 = scmp.eq.s32.totalorder %s29, 1
      %p157 = por %p155, %p156
      %p158 = scmp.ne.s32.totalorder %s149, %s150
      %p159 = scmp.eq.s32.totalorder %s29, 0
      %p160 = por %p158, %p159
      %p161 = scmp.ne.s32.totalorder %s149, %s150
      %p162 = scmp.eq.s32.totalorder %s30, 1
      %p163 = por %p161, %p162
      %p165 = scmp.ne.s32.totalorder %s150, %s164
      %p166 = scmp.eq.s32.totalorder %s30, 0
      %p167 = por %p165, %p166
      %s169 = sadd.s32 %s168, 1
      %p172 = scmp.eq.s32.totalorder %s24, 1
      %p173 = scmp.ne.s32.totalorder %s168, %s170
      %p174 = scmp.eq.s32.totalorder %s24, 0
      %p175 = por %p173, %p174
      %p176 = scmp.ne.s32.totalorder %s168, %s170
      %p177 = scmp.eq.s32.totalorder %s29, 1
      %p178 = por %p176, %p177
      %p179 = scmp.ne.s32.totalorder %s170, %s171
      %p180 = scmp.eq.s32.totalorder %s29, 0
      %p181 = por %p179, %p180
      %p182 = scmp.ne.s32.totalorder %s170, %s171
      %p183 = scmp.eq.s32.totalorder %s30, 1
      %p184 = por %p182, %p183
      %p186 = scmp.ne.s32.totalorder %s171, %s185
      %p187 = scmp.eq.s32.totalorder %s30, 0
      %p188 = por %p186, %p187
      %s190 = sadd.s32 %s189, 1
      %p193 = scmp.eq.s32.totalorder %s24, 1
      %p194 = scmp.ne.s32.totalorder %s189, %s191
      %p195 = scmp.eq.s32.totalorder %s24, 0
      %p196 = por %p194, %p195
      %p197 = scmp.ne.s32.totalorder %s189, %s191
      %p198 = scmp.eq.s32.totalorder %s29, 1
      %p199 = por %p197, %p198
      %p200 = scmp.ne.s32.totalorder %s191, %s192
      %p201 = scmp.eq.s32.totalorder %s29, 0
      %p202 = por %p200, %p201
      %p203 = scmp.ne.s32.totalorder %s191, %s192
      %p204 = scmp.eq.s32.totalorder %s30, 1
      %p205 = por %p203, %p204
      %p207 = scmp.ne.s32.totalorder %s192, %s206
      %p208 = scmp.eq.s32.totalorder %s30, 0
      %p209 = por %p207, %p208
      %s211 = sadd.s32 %s210, 1
      %p214 = scmp.eq.s32.totalorder %s24, 1
      %p215 = scmp.ne.s32.totalorder %s210, %s212
      %p216 = scmp.eq.s32.totalorder %s24, 0
      %p217 = por %p215, %p216
      %p218 = scmp.ne.s32.totalorder %s210, %s212
      %p219 = scmp.eq.s32.totalorder %s29, 1
      %p220 = por %p218, %p219
      %p221 = scmp.ne.s32.totalorder %s212, %s213
      %p222 = scmp.eq.s32.totalorder %s29, 0
      %p223 = por %p221, %p222
      %p224 = scmp.ne.s32.totalorder %s212, %s213
      %p225 = scmp.eq.s32.totalorder %s30, 1
      %p226 = por %p224, %p225
      %p228 = scmp.ne.s32.totalorder %s213, %s227
      %p229 = scmp.eq.s32.totalorder %s30, 0
      %p230 = por %p228, %p229
      %s232 = sadd.s32 %s231, 1
      %p235 = scmp.eq.s32.totalorder %s24, 1
      %p236 = scmp.ne.s32.totalorder %s231, %s233
      %p237 = scmp.eq.s32.totalorder %s24, 0
      %p238 = por %p236, %p237
      %p239 = scmp.ne.s32.totalorder %s231, %s233
      %p240 = scmp.eq.s32.totalorder %s29, 1
      %p241 = por %p239, %p240
      %p242 = scmp.ne.s32.totalorder %s233, %s234
      %p243 = scmp.eq.s32.totalorder %s29, 0
      %p244 = por %p242, %p243
      %p245 = scmp.ne.s32.totalorder %s233, %s234
      %p246 = scmp.eq.s32.totalorder %s30, 1
      %p247 = por %p245, %p246
      %p249 = scmp.ne.s32.totalorder %s234, %s248
      %p250 = scmp.eq.s32.totalorder %s30, 0
      %p251 = por %p249, %p250
      %s253 = sadd.s32 %s252, 1
      %p256 = scmp.eq.s32.totalorder %s24, 1
      %p257 = scmp.ne.s32.totalorder %s252, %s254
      %p258 = scmp.eq.s32.totalorder %s24, 0
      %p259 = por %p257, %p258
      %p260 = scmp.ne.s32.totalorder %s252, %s254
      %p261 = scmp.eq.s32.totalorder %s29, 1
      %p262 = por %p260, %p261
      %p263 = scmp.ne.s32.totalorder %s254, %s255
      %p264 = scmp.eq.s32.totalorder %s29, 0
      %p265 = por %p263, %p264
      %p266 = scmp.ne.s32.totalorder %s254, %s255
      %p267 = scmp.eq.s32.totalorder %s30, 1
      %p268 = por %p266, %p267
      %p270 = scmp.ne.s32.totalorder %s255, %s269
      %p271 = scmp.eq.s32.totalorder %s30, 0
      %p272 = por %p270, %p271
      %s274 = sadd.s32 %s273, 1
      %p277 = scmp.eq.s32.totalorder %s24, 1
      %p278 = scmp.ne.s32.totalorder %s273, %s275
      %p279 = scmp.eq.s32.totalorder %s24, 0
      %p280 = por %p278, %p279
      %p281 = scmp.ne.s32.totalorder %s273, %s275
      %p282 = scmp.eq.s32.totalorder %s29, 1
      %p283 = por %p281, %p282
      %p284 = scmp.ne.s32.totalorder %s275, %s276
      %p285 = scmp.eq.s32.totalorder %s29, 0
      %p286 = por %p284, %p285
      %p287 = scmp.ne.s32.totalorder %s275, %s276
      %p288 = scmp.eq.s32.totalorder %s30, 1
      %p289 = por %p287, %p288
      %p291 = scmp.ne.s32.totalorder %s276, %s290
      %p292 = scmp.eq.s32.totalorder %s30, 0
      %p293 = por %p291, %p292
      %s295 = sadd.s32 %s294, 1
      %p298 = scmp.eq.s32.totalorder %s24, 1
      %p299 = scmp.ne.s32.totalorder %s294, %s296
      %p300 = scmp.eq.s32.totalorder %s24, 0
      %p301 = por %p299, %p300
      %p302 = scmp.ne.s32.totalorder %s294, %s296
      %p303 = scmp.eq.s32.totalorder %s29, 1
      %p304 = por %p302, %p303
      %p305 = scmp.ne.s32.totalorder %s296, %s297
      %p306 = scmp.eq.s32.totalorder %s29, 0
      %p307 = por %p305, %p306
      %p308 = scmp.ne.s32.totalorder %s296, %s297
      %p309 = scmp.eq.s32.totalorder %s30, 1
      %p310 = por %p308, %p309
      %p312 = scmp.ne.s32.totalorder %s297, %s311
      %p313 = scmp.eq.s32.totalorder %s30, 0
      %p314 = por %p312, %p313
      %s316 = sadd.s32 %s315, 1
      %p319 = scmp.eq.s32.totalorder %s24, 1
      %p320 = scmp.ne.s32.totalorder %s315, %s317
      %p321 = scmp.eq.s32.totalorder %s24, 0
      %p322 = por %p320, %p321
      %p323 = scmp.ne.s32.totalorder %s315, %s317
      %p324 = scmp.eq.s32.totalorder %s29, 1
      %p325 = por %p323, %p324
      %p326 = scmp.ne.s32.totalorder %s317, %s318
      %p327 = scmp.eq.s32.totalorder %s29, 0
      %p328 = por %p326, %p327
      %p329 = scmp.ne.s32.totalorder %s317, %s318
      %p330 = scmp.eq.s32.totalorder %s30, 1
      %p331 = por %p329, %p330
      %p333 = scmp.ne.s32.totalorder %s318, %s332
      %p334 = scmp.eq.s32.totalorder %s30, 0
      %p335 = por %p333, %p334
      %s336 = ssub.s32 %s24, %s31
      %p337 = scmp.eq.s32.totalorder %s336, 0
      %s339 = sadd.s32 %s338, 1
      %s340 = scalar_select %p337, %s338, %s339
      %p343 = pneg %p337
      %p344 = scmp.eq.s32.totalorder %s24, 1
      %p345 = por %p343, %p344
      %p346 = scmp.ne.s32.totalorder %s338, %s341
      %p347 = scmp.eq.s32.totalorder %s24, 0
      %p348 = por %p346, %p347
      %p349 = scmp.ne.s32.totalorder %s338, %s341
      %p350 = scmp.eq.s32.totalorder %s29, 1
      %p351 = por %p349, %p350
      %p352 = scmp.ne.s32.totalorder %s341, %s342
      %p353 = scmp.eq.s32.totalorder %s29, 0
      %p354 = por %p352, %p353
      %p355 = scmp.ne.s32.totalorder %s341, %s342
      %p356 = scmp.eq.s32.totalorder %s30, 1
      %p357 = por %p355, %p356
      %p359 = scmp.ne.s32.totalorder %s342, %s358
      %p360 = scmp.eq.s32.totalorder %s30, 0
      %p361 = por %p359, %p360
      %p362 = scmp.le.s32.totalorder 1, %s24
      %p363 = scmp.lt.s32.totalorder %s24, 3
      %p364 = pnand %p362, %p363
      %p365 = pneg %p364
      // Predicated region
      $region9: #{fuse_reduce_forward.1} parent=5 // pred_check
        _
      $region10: #{fuse_reduce_forward.1} parent=5 // pred_check_branch
        %367 = sbr.rel (%p364) target = $region12
      $region11: #{fuse_reduce_forward.1} parent=5 // pred_region
        %s368 = ssub.s32 %s24, 1
        // Predicated region
        $region13: #{fuse_reduce_forward.1} parent=11 // pred_check
          %p369 = pneg %p97
        $region14: #{fuse_reduce_forward.1} parent=11 // pred_check_branch
          %371 = sbr.rel (%p369) target = $region16
        $region15: #{fuse_reduce_forward.1} parent=11 // pred_region
          _
        $region16: #{fuse_reduce_forward.1} parent=11 // pred_fallthru
          _
        // Predicated region
        $region17: #{fuse_reduce_forward.1} parent=11 // pred_check
          %p372 = pneg %p118
        $region18: #{fuse_reduce_forward.1} parent=11 // pred_check_branch
          %374 = sbr.rel (%p372) target = $region20
        $region19: #{fuse_reduce_forward.1} parent=11 // pred_region
          _
        $region20: #{fuse_reduce_forward.1} parent=11 // pred_fallthru
          _
        // Predicated region
        $region21: #{fuse_reduce_forward.1} parent=11 // pred_check
          %p375 = pneg %p139
        $region22: #{fuse_reduce_forward.1} parent=11 // pred_check_branch
          %377 = sbr.rel (%p375) target = $region24
        $region23: #{fuse_reduce_forward.1} parent=11 // pred_region
          _
        $region24: #{fuse_reduce_forward.1} parent=11 // pred_fallthru
          _
        // Predicated region
        $region25: #{fuse_reduce_forward.1} parent=11 // pred_check
          %p378 = pneg %p160
        $region26: #{fuse_reduce_forward.1} parent=11 // pred_check_branch
          %380 = sbr.rel (%p378) target = $region28
        $region27: #{fuse_reduce_forward.1} parent=11 // pred_region
          _
        $region28: #{fuse_reduce_forward.1} parent=11 // pred_fallthru
          _
        // Predicated region
        $region29: #{fuse_reduce_forward.1} parent=11 // pred_check
          %p381 = pneg %p181
        $region30: #{fuse_reduce_forward.1} parent=11 // pred_check_branch
          %383 = sbr.rel (%p381) target = $region32
        $region31: #{fuse_reduce_forward.1} parent=11 // pred_region
          _
        $region32: #{fuse_reduce_forward.1} parent=11 // pred_fallthru
          _
        // Predicated region
        $region33: #{fuse_reduce_forward.1} parent=11 // pred_check
          %p384 = pneg %p202
        $region34: #{fuse_reduce_forward.1} parent=11 // pred_check_branch
          %386 = sbr.rel (%p384) target = $region36
        $region35: #{fuse_reduce_forward.1} parent=11 // pred_region
          _
        $region36: #{fuse_reduce_forward.1} parent=11 // pred_fallthru
          _
        // Predicated region
        $region37: #{fuse_reduce_forward.1} parent=11 // pred_check
          %p387 = pneg %p223
        $region38: #{fuse_reduce_forward.1} parent=11 // pred_check_branch
          %389 = sbr.rel (%p387) target = $region40
        $region39: #{fuse_reduce_forward.1} parent=11 // pred_region
          _
        $region40: #{fuse_reduce_forward.1} parent=11 // pred_fallthru
          _
        // Predicated region
        $region41: #{fuse_reduce_forward.1} parent=11 // pred_check
          %p390 = pneg %p244
        $region42: #{fuse_reduce_forward.1} parent=11 // pred_check_branch
          %392 = sbr.rel (%p390) target = $region44
        $region43: #{fuse_reduce_forward.1} parent=11 // pred_region
          %394 = vsyncadd [#allocation5], 0
          %s395 = sshll.u32 %s9, 4
          %s396 = int_to_ptr.hbm [resolvable:$true] %s395
          %s397 = sshll.u32 [#allocation4], 4
          %s398 = int_to_ptr.vmem [resolvable:$true] %s397
          %403 = dma.hbm_to_vmem [thread:$0]  %s396, 1024, %s398, [#allocation5], 128, 128, 8
        $region44: #{fuse_reduce_forward.1} parent=11 // pred_fallthru
          _
        // Predicated region
        $region45: #{fuse_reduce_forward.1} parent=11 // pred_check
          %p404 = pneg %p265
        $region46: #{fuse_reduce_forward.1} parent=11 // pred_check_branch
          %406 = sbr.rel (%p404) target = $region48
        $region47: #{fuse_reduce_forward.1} parent=11 // pred_region
          %408 = vsyncadd [#allocation5], 0
          %s409 = sshll.u32 %s10, 4
          %s410 = int_to_ptr.hbm [resolvable:$true] %s409
          %s411 = sshll.u32 [#allocation6], 4
          %s412 = int_to_ptr.vmem [resolvable:$true] %s411
          %417 = dma.hbm_to_vmem [thread:$0]  %s410, 18432, %s412, [#allocation5], 128, 128, 8
        $region48: #{fuse_reduce_forward.1} parent=11 // pred_fallthru
          _
        // Predicated region
        $region49: #{fuse_reduce_forward.1} parent=11 // pred_check
          %p418 = pneg %p286
        $region50: #{fuse_reduce_forward.1} parent=11 // pred_check_branch
          %420 = sbr.rel (%p418) target = $region52
        $region51: #{fuse_reduce_forward.1} parent=11 // pred_region
          _
        $region52: #{fuse_reduce_forward.1} parent=11 // pred_fallthru
          _
        // Predicated region
        $region53: #{fuse_reduce_forward.1} parent=11 // pred_check
          %p421 = pneg %p307
        $region54: #{fuse_reduce_forward.1} parent=11 // pred_check_branch
          %423 = sbr.rel (%p421) target = $region56
        $region55: #{fuse_reduce_forward.1} parent=11 // pred_region
          _
        $region56: #{fuse_reduce_forward.1} parent=11 // pred_fallthru
          _
        // Predicated region
        $region57: #{fuse_reduce_forward.1} parent=11 // pred_check
          %p424 = pneg %p328
        $region58: #{fuse_reduce_forward.1} parent=11 // pred_check_branch
          %426 = sbr.rel (%p424) target = $region60
        $region59: #{fuse_reduce_forward.1} parent=11 // pred_region
          _
        $region60: #{fuse_reduce_forward.1} parent=11 // pred_fallthru
          _
      $region12: #{fuse_reduce_forward.1} parent=5 // pred_fallthru
        _
      %p427 = scmp.lt.s32.totalorder %s24, 2
      // Predicated region
      $region61: #{fuse_reduce_forward.1} parent=5 // pred_check
        %p428 = pneg %p427
      $region62: #{fuse_reduce_forward.1} parent=5 // pred_check_branch
        %430 = sbr.rel (%p428) target = $region64
      $region63: #{fuse_reduce_forward.1} parent=5 // pred_region
        // Predicated region
        $region65: #{fuse_reduce_forward.1} parent=63 // pred_check
          %p431 = pneg %p44
        $region66: #{fuse_reduce_forward.1} parent=63 // pred_check_branch
          %433 = sbr.rel (%p431) target = $region68
        $region67: #{fuse_reduce_forward.1} parent=63 // pred_region
          %s434 = sand.u32 %s34, 1
          %s435 = scalar_lea.sflag [#allocation3], %s434
          %s436 = sand.u32 %s34, 1
          %s437 = smul.addr %s436, 64
          %s438 = scalar_lea.vmem [#allocation2], %s437
          %440 = vsyncadd %s435, 0
          %s441 = smul.addr %s24, 8
          %s442 = smul.addr %s441, 8
          %s443 = scalar_lea.hbm %s0, %s442
          %s444 = sshll.u32 %s443, 4
          %s445 = int_to_ptr.hbm [resolvable:$true] %s444
          %s446 = sshll.u32 %s438, 4
          %s447 = int_to_ptr.vmem [resolvable:$true] %s446
          %452 = dma.hbm_to_vmem [thread:$0]  %s445, 1024, %s447, %s435, 128, 128, 8
        $region68: #{fuse_reduce_forward.1} parent=63 // pred_fallthru
          _
        // Predicated region
        $region69: #{fuse_reduce_forward.1} parent=63 // pred_check
          %p453 = pneg %p70
        $region70: #{fuse_reduce_forward.1} parent=63 // pred_check_branch
          %455 = sbr.rel (%p453) target = $region72
        $region71: #{fuse_reduce_forward.1} parent=63 // pred_region
          %p456 = scmp.lt.s32.totalorder %s24, 1
          %s457 = scalar_select %p456, %s24, 1
          %s458 = smul.addr %s457, 8
          %s459 = smul.addr %s458, 8
          %s460 = scalar_lea.vmem %s1, %s459
        $region72: #{fuse_reduce_forward.1} parent=63 // pred_fallthru
          _
      $region64: #{fuse_reduce_forward.1} parent=5 // pred_fallthru
        _
      %p461 = scmp.le.s32.totalorder 1, %s24
      %p462 = scmp.lt.s32.totalorder %s24, 3
      %p463 = pnand %p461, %p462
      %p464 = pneg %p463
      // Predicated region
      $region73: #{fuse_reduce_forward.1} parent=5 // pred_check
        _
      $region74: #{fuse_reduce_forward.1} parent=5 // pred_check_branch
        %466 = sbr.rel (%p463) target = $region76
      $region75: #{fuse_reduce_forward.1} parent=5 // pred_region
        %s467 = ssub.s32 %s24, 1
        %s468 = sand.u32 %s37, 1
        %s469 = scalar_lea.sflag [#allocation3], %s468
        %s470 = sand.u32 %s37, 1
        %s471 = smul.addr %s470, 64
        %s472 = scalar_lea.vmem [#allocation2], %s471
        // Predicated region
        $region77: #{fuse_reduce_forward.1} parent=75 // pred_check
          %p473 = pneg %p50
        $region78: #{fuse_reduce_forward.1} parent=75 // pred_check_branch
          %475 = sbr.rel (%p473) target = $region80
        $region79: #{fuse_reduce_forward.1} parent=75 // pred_region
          %477 = dma.done %s469, 1024
        $region80: #{fuse_reduce_forward.1} parent=75 // pred_fallthru
          _
        // Predicated region
        $region81: #{fuse_reduce_forward.1} parent=75 // pred_check
          %p478 = pneg %p244
        $region82: #{fuse_reduce_forward.1} parent=75 // pred_check_branch
          %480 = sbr.rel (%p478) target = $region84
        $region83: #{fuse_reduce_forward.1} parent=75 // pred_region
          %482 = dma.done [#allocation5], 1024
        $region84: #{fuse_reduce_forward.1} parent=75 // pred_fallthru
          _
        // Predicated region
        $region85: #{fuse_reduce_forward.1} parent=75 // pred_check
          %p483 = pneg %p265
        $region86: #{fuse_reduce_forward.1} parent=75 // pred_check_branch
          %485 = sbr.rel (%p483) target = $region88
        $region87: #{fuse_reduce_forward.1} parent=75 // pred_region
          %487 = dma.done [#allocation5], 18432
        $region88: #{fuse_reduce_forward.1} parent=75 // pred_fallthru
          _
        %s488 = sand.u32 %s37, 1
        %s489 = scalar_lea.sflag [#allocation3], %s488
        %s490 = sand.u32 %s37, 1
        %s491 = smul.addr %s490, 64
        %s492 = scalar_lea.vmem [#allocation2], %s491
        %p493 = pneg %p50
        %p494 = pneg %p47
        %p495 = scmp.lt.s32.totalorder %s29, 1
        %s496 = scalar_select %p495, %s29, 1
        %s497 = smul.addr %s496, 8
        %s498 = smul.addr %s497, 8
        %s499 = scalar_lea.vmem %s1, %s498
        %p500 = pneg %p76
        %p501 = pneg %p73
        %p502 = pneg %p97
        %p503 = pneg %p94
        %p504 = pneg %p118
        %p505 = pneg %p115
        %p506 = pneg %p139
        %p507 = pneg %p136
        %p508 = pneg %p160
        %p509 = pneg %p157
        %p510 = pneg %p181
        %p511 = pneg %p178
        %p512 = pneg %p202
        %p513 = pneg %p199
        %p514 = pneg %p223
        %p515 = pneg %p220
        %p516 = pneg %p244
        %p517 = pneg %p241
        %p518 = pneg %p265
        %p519 = pneg %p262
        %p520 = pneg %p286
        %p521 = pneg %p283
        %p522 = pneg %p307
        %p523 = pneg %p304
        %p524 = pneg %p328
        %p525 = pneg %p325
        %p526 = pneg %p354
        %p527 = pneg %p351
        %p528 = scmp.lt.s32.totalorder %s29, 1
        %s529 = scalar_select %p528, %s29, 1
        %s530 = smul.addr %s529, 8
        %s531 = smul.addr %s530, 8
        %s532 = scalar_lea.vmem %s14, %s531
        %p533 = scmp.lt.s32.totalorder %s29, 1
        %s534 = scalar_select %p533, %s29, 1
        %s535 = smul.addr %s534, 8
        %s536 = smul.addr %s535, 8
        %s537 = scalar_lea.vmem %s1, %s536
        %p538 = scmp.lt.s32.totalorder %s29, 1
        %s539 = scalar_select %p538, %s29, 1
        %s540 = smul.addr %s539, 8
        %s541 = smul.addr %s540, 8
        %s542 = scalar_lea.vmem %s14, %s541
        %v544 = vld [vmem:[%s472] sm:$0xff]
        %v545 = vld [vmem:[%s472 + $0x8] sm:$0xff]
        %v546 = vld [vmem:[%s472 + $0x10] sm:$0xff]
        %v547 = vld [vmem:[%s472 + $0x18] sm:$0xff]
        %v548 = vld [vmem:[%s472 + $0x20] sm:$0xff]
        %v549 = vld [vmem:[%s472 + $0x28] sm:$0xff]
        %v550 = vld [vmem:[%s472 + $0x30] sm:$0xff]
        %v551 = vld [vmem:[%s472 + $0x38] sm:$0xff]
        %v552 = vpack.c.bf16 %v545, %v544
        %v553 = vpack.c.bf16 %v547, %v546
        %v554 = vpack.c.bf16 %v549, %v548
        %v555 = vpack.c.bf16 %v551, %v550
        %v556 = vld [vmem:[%s2] sm:$0xf]
        %v557 = vld [vmem:[%s2 + $0x4] sm:$0xf]
        %v558 = vld [vmem:[%s2 + $0x8] sm:$0xf]
        %v559 = vld [vmem:[%s2 + $0xc] sm:$0xf]
        %v564 = vunpack.c.l.b16 %v556
        %v565 = vunpack.c.l.b16 %v557
        %v566 = vunpack.c.l.b16 %v558
        %v567 = vunpack.c.l.b16 %v559
        %v568 = vpack.c.b16 %v565, %v564
        %v569 = vpack.c.b16 %v567, %v566
        %vm572 = vcmask 261120
        %v574 = vsel %vm572, %v552, 0
        %v577 = vsel %vm572, %v553, 0
        %v580 = vsel %vm572, %v554, 0
        %v583 = vsel %vm572, %v555, 0
        %585 = vmatpush.bf16.msra.mxu0 0
        %586 = vmatpush.bf16.msra.mxu0 0
        %587 = vmatpush.bf16.msra.mxu0 0
        %588 = vmatpush.bf16.msra.mxu0 0
        %589 = vmatpush.bf16.msra.mxu0 0
        %590 = vmatpush.bf16.msra.mxu0 0
        %591 = vmatpush.bf16.msra.mxu0 %v569
        %592 = vmatpush.bf16.msra.mxu0 %v568
        %593 = vmatmul.bf16.gmra.mxu0 %v574
        %v594 = vpop.f32.mrf.mxu0
        %v595 = vadd.f32 0.0, %v594
        %v596 = vpop.f32.mrf.mxu0
        %v597 = vadd.f32 0.0, %v596
        %598 = vmatmul.bf16.gmra.mxu0 %v577
        %v599 = vpop.f32.mrf.mxu0
        %v600 = vadd.f32 0.0, %v599
        %v601 = vpop.f32.mrf.mxu0
        %v602 = vadd.f32 0.0, %v601
        %603 = vmatmul.bf16.gmra.mxu0 %v580
        %v604 = vpop.f32.mrf.mxu0
        %v605 = vadd.f32 0.0, %v604
        %v606 = vpop.f32.mrf.mxu0
        %v607 = vadd.f32 0.0, %v606
        %608 = vmatmul.bf16.gmra.mxu0 %v583
        %v609 = vpop.f32.mrf.mxu0
        %v610 = vadd.f32 0.0, %v609
        %v611 = vpop.f32.mrf.mxu0
        %v612 = vadd.f32 0.0, %v611
        %613 = vdwg.mxu0
        %v614 = vld [vmem:[%s3] sm:$0x1]
        %v616 = vperm.slane %v614, 0
        %v618 = vmul.f32 %v595, %v616
        %v619 = vmul.f32 %v597, %v616
        %v620 = vmul.f32 %v600, %v616
        %v621 = vmul.f32 %v602, %v616
        %v622 = vmul.f32 %v605, %v616
        %v623 = vmul.f32 %v607, %v616
        %v624 = vmul.f32 %v610, %v616
        %v625 = vmul.f32 %v612, %v616
        %v626 = vld [vmem:[%s4] sm:$0x1]
        %v628 = vperm.slane %v626, 0
        %v630 = vadd.f32 %v618, %v628
        %v631 = vadd.f32 %v619, %v628
        %v632 = vadd.f32 %v620, %v628
        %v633 = vadd.f32 %v621, %v628
        %v634 = vadd.f32 %v622, %v628
        %v635 = vadd.f32 %v623, %v628
        %v636 = vadd.f32 %v624, %v628
        %v637 = vadd.f32 %v625, %v628
        %v638 = vmax.f32 %v630, 0.0
        %v639 = vmax.f32 %v631, 0.0
        %v640 = vmax.f32 %v632, 0.0
        %v641 = vmax.f32 %v633, 0.0
        %v642 = vmax.f32 %v634, 0.0
        %v643 = vmax.f32 %v635, 0.0
        %v644 = vmax.f32 %v636, 0.0
        %v645 = vmax.f32 %v637, 0.0
        %vm646 = vcmask 523264
        %v647 = vsel %vm646, %v638, 0.0
        %v648 = vsel %vm646, %v639, 0.0
        %v649 = vadd.f32 %v647, %v648
        %v650 = vsel %vm646, %v640, 0.0
        %v651 = vadd.f32 %v649, %v650
        %v652 = vsel %vm646, %v641, 0.0
        %v653 = vadd.f32 %v651, %v652
        %v654 = vsel %vm646, %v642, 0.0
        %v655 = vadd.f32 %v653, %v654
        %v656 = vsel %vm646, %v643, 0.0
        %v657 = vadd.f32 %v655, %v656
        %v658 = vsel %vm646, %v644, 0.0
        %v659 = vadd.f32 %v657, %v658
        %v660 = vsel %vm646, %v645, 0.0
        %v661 = vadd.f32 %v659, %v660
        %v662 = vrot.slane %v661, 4
        %v663 = vadd.f32 %v661, %v662
        %v664 = vrot.slane %v663, 2
        %v665 = vadd.f32 %v663, %v664
        %v666 = vrot.slane %v665, 1
        %v667 = vadd.f32 %v665, %v666
        %v668 = vrcp.pop 64.0
        %v669 = vmul.f32 64.0, %v668
        %v670 = vsub.f32 1.0, %v669
        %v671 = vmul.f32 %v668, %v670
        %v672 = vadd.f32 %v668, %v671
        %vm673 = vweird.f32 %v668
        %v674 = vsel %vm673, %v668, %v672
        %v675 = vmul.f32 %v667, %v674
        %v676 = vld [vmem:[%s5] sm:$0xff]
        %v677 = vld [vmem:[%s5 + $0x8] sm:$0xff]
        %v678 = vld [vmem:[%s5 + $0x10] sm:$0xff]
        %v679 = vld [vmem:[%s5 + $0x18] sm:$0xff]
        %v680 = vld [vmem:[%s5 + $0x20] sm:$0xff]
        %v681 = vld [vmem:[%s5 + $0x28] sm:$0xff]
        %v682 = vld [vmem:[%s5 + $0x30] sm:$0xff]
        %v683 = vld [vmem:[%s5 + $0x38] sm:$0xff]
        %v685 = vsel %vm646, %v675, 0
        %687 = vmatpush.msra.mxu0 0.0
        %688 = vmatpush.msra.mxu0 0.0
        %689 = vmatpush.msra.mxu0 0.0
        %690 = vmatpush.msra.mxu0 0.0
        %691 = vmatpush.msra.mxu0 0.0
        %692 = vmatpush.msra.mxu0 0.0
        %693 = vmatpush.msra.mxu0 0.0
        %694 = vmatpush.msra.mxu0 0.0
        %695 = vmatpush.msra.mxu0 %v683
        %696 = vmatpush.msra.mxu0 %v682
        %697 = vmatpush.msra.mxu0 %v681
        %698 = vmatpush.msra.mxu0 %v680
        %699 = vmatpush.msra.mxu0 %v679
        %700 = vmatpush.msra.mxu0 %v678
        %701 = vmatpush.msra.mxu0 %v677
        %702 = vmatpush.msra.mxu0 %v676
        %703 = vmatmul.f32.gmra.mxu0 %v685
        %v704 = vpop.f32.mrf.mxu0
        %v705 = vadd.f32 0.0, %v704
        %706 = vdwg.mxu0
        %v707 = vxor.u32 %v705, 2147483648
        %v708 = vmul.f32 %v707, 1.442695
        %v709 = vpow.pop %v708
        %v710 = vadd.f32 %v709, 1.0
        %v711 = vrcp.pop %v710
        %v712 = vmul.f32 %v710, %v711
        %v713 = vsub.f32 1.0, %v712
        %v714 = vmul.f32 %v711, %v713
        %v715 = vadd.f32 %v711, %v714
        %vm716 = vweird.f32 %v710
        %vm717 = vweird.f32 %v711
        %vm718 = vmor %vm716, %vm717
        %v719 = vsel %vm718, %v711, %v715
        %v720 = vand.u32 2147483647, %v710
        %vm721 = vcmp.eq.f32.partialorder %v720, 8.507059e+37
        %v722 = vand.u32 %v710, 2147483648
        %v723 = vor.u32 1.1754944e-38, %v722
        %v724 = vsel %vm721, %v723, %v719
        %v725 = vmul.f32 1.0, %v724
        %v726 = vperm.slane %v725, 0
        %v727 = vmul.f32 %v638, %v726
        %v728 = vmul.f32 %v639, %v726
        %v729 = vmul.f32 %v640, %v726
        %v730 = vmul.f32 %v641, %v726
        %v731 = vmul.f32 %v642, %v726
        %v732 = vmul.f32 %v643, %v726
        %v733 = vmul.f32 %v644, %v726
        %v734 = vmul.f32 %v645, %v726
        %v735 = vld [vmem:[%s537] sm:$0xff]
        %v736 = vld [vmem:[%s537 + $0x8] sm:$0xff]
        %v737 = vld [vmem:[%s537 + $0x10] sm:$0xff]
        %v738 = vld [vmem:[%s537 + $0x18] sm:$0xff]
        %v739 = vld [vmem:[%s537 + $0x20] sm:$0xff]
        %v740 = vld [vmem:[%s537 + $0x28] sm:$0xff]
        %v741 = vld [vmem:[%s537 + $0x30] sm:$0xff]
        %v742 = vld [vmem:[%s537 + $0x38] sm:$0xff]
        %v743 = vmul.f32 %v735, %v727
        %v744 = vmul.f32 %v736, %v728
        %v745 = vmul.f32 %v737, %v729
        %v746 = vmul.f32 %v738, %v730
        %v747 = vmul.f32 %v739, %v731
        %v748 = vmul.f32 %v740, %v732
        %v749 = vmul.f32 %v741, %v733
        %v750 = vmul.f32 %v742, %v734
        %v751 = vpack.c.bf16 %v744, %v743
        %v752 = vpack.c.bf16 %v746, %v745
        %v753 = vpack.c.bf16 %v748, %v747
        %v754 = vpack.c.bf16 %v750, %v749
        %v755 = vld [vmem:[%s6] sm:$0xf]
        %v756 = vld [vmem:[%s6 + $0x4] sm:$0xf]
        %v757 = vld [vmem:[%s6 + $0x8] sm:$0xf]
        %v758 = vld [vmem:[%s6 + $0xc] sm:$0xf]
        %v759 = vld [vmem:[%s6 + $0x10] sm:$0xf]
        %v760 = vld [vmem:[%s6 + $0x14] sm:$0xf]
        %v761 = vld [vmem:[%s6 + $0x18] sm:$0xf]
        %v762 = vld [vmem:[%s6 + $0x1c] sm:$0xf]
        %v771 = vunpack.c.l.b16 %v755
        %v772 = vunpack.c.l.b16 %v756
        %v773 = vunpack.c.l.b16 %v757
        %v774 = vunpack.c.l.b16 %v758
        %v775 = vunpack.c.l.b16 %v759
        %v776 = vunpack.c.l.b16 %v760
        %v777 = vunpack.c.l.b16 %v761
        %v778 = vunpack.c.l.b16 %v762
        %v779 = vpack.c.b16 %v772, %v771
        %v780 = vpack.c.b16 %v774, %v773
        %v781 = vpack.c.b16 %v776, %v775
        %v782 = vpack.c.b16 %v778, %v777
        %v788 = vsel %vm646, %v751, 0
        %v791 = vsel %vm646, %v752, 0
        %v794 = vsel %vm646, %v753, 0
        %v797 = vsel %vm646, %v754, 0
        %799 = vmatpush.bf16.msra.mxu0 0
        %800 = vmatpush.bf16.msra.mxu0 0
        %801 = vmatpush.bf16.msra.mxu0 0
        %802 = vmatpush.bf16.msra.mxu0 0
        %803 = vmatpush.bf16.msra.mxu0 %v782
        %804 = vmatpush.bf16.msra.mxu0 %v781
        %805 = vmatpush.bf16.msra.mxu0 %v780
        %806 = vmatpush.bf16.msra.mxu0 %v779
        %807 = vmatmul.bf16.gmra.mxu0 %v788
        %v808 = vpop.f32.mrf.mxu0
        %v809 = vadd.f32 0.0, %v808
        %v810 = vpop.f32.mrf.mxu0
        %v811 = vadd.f32 0.0, %v810
        %812 = vmatmul.bf16.gmra.mxu0 %v791
        %v813 = vpop.f32.mrf.mxu0
        %v814 = vadd.f32 0.0, %v813
        %v815 = vpop.f32.mrf.mxu0
        %v816 = vadd.f32 0.0, %v815
        %817 = vmatmul.bf16.gmra.mxu0 %v794
        %v818 = vpop.f32.mrf.mxu0
        %v819 = vadd.f32 0.0, %v818
        %v820 = vpop.f32.mrf.mxu0
        %v821 = vadd.f32 0.0, %v820
        %822 = vmatmul.bf16.gmra.mxu0 %v797
        %v823 = vpop.f32.mrf.mxu0
        %v824 = vadd.f32 0.0, %v823
        %v825 = vpop.f32.mrf.mxu0
        %v826 = vadd.f32 0.0, %v825
        %827 = vdwg.mxu0
        %v828 = vld [vmem:[%s7] sm:$0x1]
        %v830 = vperm.slane %v828, 0
        %v832 = vmul.f32 %v809, %v830
        %v833 = vmul.f32 %v811, %v830
        %v834 = vmul.f32 %v814, %v830
        %v835 = vmul.f32 %v816, %v830
        %v836 = vmul.f32 %v819, %v830
        %v837 = vmul.f32 %v821, %v830
        %v838 = vmul.f32 %v824, %v830
        %v839 = vmul.f32 %v826, %v830
        %v840 = vld [vmem:[%s8] sm:$0x1]
        %v842 = vperm.slane %v840, 0
        %v844 = vadd.f32 %v832, %v842
        %v845 = vadd.f32 %v833, %v842
        %v846 = vadd.f32 %v834, %v842
        %v847 = vadd.f32 %v835, %v842
        %v848 = vadd.f32 %v836, %v842
        %v849 = vadd.f32 %v837, %v842
        %v850 = vadd.f32 %v838, %v842
        %v851 = vadd.f32 %v839, %v842
        %v852 = vmax.f32 %v844, 0.0
        %v853 = vmax.f32 %v845, 0.0
        %v854 = vmax.f32 %v846, 0.0
        %v855 = vmax.f32 %v847, 0.0
        %v856 = vmax.f32 %v848, 0.0
        %v857 = vmax.f32 %v849, 0.0
        %v858 = vmax.f32 %v850, 0.0
        %v859 = vmax.f32 %v851, 0.0
        %vm860 = vcmask 130048
        %v861 = vsel %vm860, %v852, 0.0
        %862 = vadd.xlane.f32.xlu0 %v861
        %v863 = vpop.xlane.xlu0 %862
        %v864 = vsel %vm860, %v853, 0.0
        %865 = vadd.xlane.f32.xlu0 %v864
        %v866 = vpop.xlane.xlu0 %865
        %v867 = vsel %vm860, %v854, 0.0
        %868 = vadd.xlane.f32.xlu0 %v867
        %v869 = vpop.xlane.xlu0 %868
        %v870 = vsel %vm860, %v855, 0.0
        %871 = vadd.xlane.f32.xlu0 %v870
        %v872 = vpop.xlane.xlu0 %871
        %v873 = vsel %vm860, %v856, 0.0
        %874 = vadd.xlane.f32.xlu0 %v873
        %v875 = vpop.xlane.xlu0 %874
        %v876 = vsel %vm860, %v857, 0.0
        %877 = vadd.xlane.f32.xlu0 %v876
        %v878 = vpop.xlane.xlu0 %877
        %v879 = vsel %vm860, %v858, 0.0
        %880 = vadd.xlane.f32.xlu0 %v879
        %v881 = vpop.xlane.xlu0 %880
        %v882 = vsel %vm860, %v859, 0.0
        %883 = vadd.xlane.f32.xlu0 %v882
        %v884 = vpop.xlane.xlu0 %883
        %v885 = vrcp.pop 16.0
        %v886 = vmul.f32 16.0, %v885
        %v887 = vsub.f32 1.0, %v886
        %v888 = vmul.f32 %v885, %v887
        %v889 = vadd.f32 %v885, %v888
        %vm890 = vweird.f32 %v885
        %v891 = vsel %vm890, %v885, %v889
        %v892 = vmul.f32 %v863, %v891
        %v893 = vmul.f32 %v866, %v891
        %v894 = vmul.f32 %v869, %v891
        %v895 = vmul.f32 %v872, %v891
        %v896 = vmul.f32 %v875, %v891
        %v897 = vmul.f32 %v878, %v891
        %v898 = vmul.f32 %v881, %v891
        %v899 = vmul.f32 %v884, %v891
        %v900 = vsel %vm860, %v852, -inf
        %901 = vmax.xlane.f32.xlu0 %v900
        %v902 = vpop.xlane.xlu0 %901
        %v903 = vsel %vm860, %v853, -inf
        %904 = vmax.xlane.f32.xlu0 %v903
        %v905 = vpop.xlane.xlu0 %904
        %v906 = vsel %vm860, %v854, -inf
        %907 = vmax.xlane.f32.xlu0 %v906
        %v908 = vpop.xlane.xlu0 %907
        %v909 = vsel %vm860, %v855, -inf
        %910 = vmax.xlane.f32.xlu0 %v909
        %v911 = vpop.xlane.xlu0 %910
        %v912 = vsel %vm860, %v856, -inf
        %913 = vmax.xlane.f32.xlu0 %v912
        %v914 = vpop.xlane.xlu0 %913
        %v915 = vsel %vm860, %v857, -inf
        %916 = vmax.xlane.f32.xlu0 %v915
        %v917 = vpop.xlane.xlu0 %916
        %v918 = vsel %vm860, %v858, -inf
        %919 = vmax.xlane.f32.xlu0 %v918
        %v920 = vpop.xlane.xlu0 %919
        %v921 = vsel %vm860, %v859, -inf
        %922 = vmax.xlane.f32.xlu0 %v921
        %v923 = vpop.xlane.xlu0 %922
        %925 = vset.pattern.permute.xlu0 0
        %926 = vperm.xlu0 %925, %v892
        %v927 = vpop.permute.xlu0 %926
        %930 = vset.pattern.permute.xlu0 0
        %931 = vperm.xlu0 %930, %v893
        %v932 = vpop.permute.xlu0 %931
        %935 = vset.pattern.permute.xlu0 0
        %936 = vperm.xlu0 %935, %v894
        %v937 = vpop.permute.xlu0 %936
        %940 = vset.pattern.permute.xlu0 0
        %941 = vperm.xlu0 %940, %v895
        %v942 = vpop.permute.xlu0 %941
        %945 = vset.pattern.permute.xlu0 0
        %946 = vperm.xlu0 %945, %v896
        %v947 = vpop.permute.xlu0 %946
        %950 = vset.pattern.permute.xlu0 0
        %951 = vperm.xlu0 %950, %v897
        %v952 = vpop.permute.xlu0 %951
        %955 = vset.pattern.permute.xlu0 0
        %956 = vperm.xlu0 %955, %v898
        %v957 = vpop.permute.xlu0 %956
        %960 = vset.pattern.permute.xlu0 0
        %961 = vperm.xlu0 %960, %v899
        %v962 = vpop.permute.xlu0 %961
        %965 = vset.pattern.permute.xlu0 0
        %966 = vperm.xlu0 %965, %v902
        %v967 = vpop.permute.xlu0 %966
        %970 = vset.pattern.permute.xlu0 0
        %971 = vperm.xlu0 %970, %v905
        %v972 = vpop.permute.xlu0 %971
        %975 = vset.pattern.permute.xlu0 0
        %976 = vperm.xlu0 %975, %v908
        %v977 = vpop.permute.xlu0 %976
        %980 = vset.pattern.permute.xlu0 0
        %981 = vperm.xlu0 %980, %v911
        %v982 = vpop.permute.xlu0 %981
        %985 = vset.pattern.permute.xlu0 0
        %986 = vperm.xlu0 %985, %v914
        %v987 = vpop.permute.xlu0 %986
        %990 = vset.pattern.permute.xlu0 0
        %991 = vperm.xlu0 %990, %v917
        %v992 = vpop.permute.xlu0 %991
        %995 = vset.pattern.permute.xlu0 0
        %996 = vperm.xlu0 %995, %v920
        %v997 = vpop.permute.xlu0 %996
        %1000 = vset.pattern.permute.xlu0 0
        %1001 = vperm.xlu0 %1000, %v923
        %v1002 = vpop.permute.xlu0 %1001
        %v1004 = vld [vmem:[#allocation4] sm:$0xff]
        %v1005 = vld [vmem:[#allocation4 + $0x8] sm:$0xff]
        %v1006 = vld [vmem:[#allocation4 + $0x10] sm:$0xff]
        %v1007 = vld [vmem:[#allocation4 + $0x18] sm:$0xff]
        %v1008 = vld [vmem:[#allocation4 + $0x20] sm:$0xff]
        %v1009 = vld [vmem:[#allocation4 + $0x28] sm:$0xff]
        %v1010 = vld [vmem:[#allocation4 + $0x30] sm:$0xff]
        %v1011 = vld [vmem:[#allocation4 + $0x38] sm:$0xff]
        %1012 = vmatpush.msra.mxu0 %v1002
        %1013 = vmatpush.msra.mxu0 %v997
        %1014 = vmatpush.msra.mxu0 %v992
        %1015 = vmatpush.msra.mxu0 %v987
        %1016 = vmatpush.msra.mxu0 %v982
        %1017 = vmatpush.msra.mxu0 %v977
        %1018 = vmatpush.msra.mxu0 %v972
        %1019 = vmatpush.msra.mxu0 %v967
        %1020 = vmatpush.msra.mxu0 %v962
        %1021 = vmatpush.msra.mxu0 %v957
        %1022 = vmatpush.msra.mxu0 %v952
        %1023 = vmatpush.msra.mxu0 %v947
        %1024 = vmatpush.msra.mxu0 %v942
        %1025 = vmatpush.msra.mxu0 %v937
        %1026 = vmatpush.msra.mxu0 %v932
        %1027 = vmatpush.msra.mxu0 %v927
        %1028 = vmatmul.f32.gmra.mxu0 %v1004
        %v1029 = vpop.f32.mrf.mxu0
        %v1030 = vadd.f32 0.0, %v1029
        %1031 = vmatmul.f32.gmra.mxu0 %v1005
        %v1032 = vpop.f32.mrf.mxu0
        %v1033 = vadd.f32 0.0, %v1032
        %1034 = vmatmul.f32.gmra.mxu0 %v1006
        %v1035 = vpop.f32.mrf.mxu0
        %v1036 = vadd.f32 0.0, %v1035
        %1037 = vmatmul.f32.gmra.mxu0 %v1007
        %v1038 = vpop.f32.mrf.mxu0
        %v1039 = vadd.f32 0.0, %v1038
        %1040 = vmatmul.f32.gmra.mxu0 %v1008
        %v1041 = vpop.f32.mrf.mxu0
        %v1042 = vadd.f32 0.0, %v1041
        %1043 = vmatmul.f32.gmra.mxu0 %v1009
        %v1044 = vpop.f32.mrf.mxu0
        %v1045 = vadd.f32 0.0, %v1044
        %1046 = vmatmul.f32.gmra.mxu0 %v1010
        %v1047 = vpop.f32.mrf.mxu0
        %v1048 = vadd.f32 0.0, %v1047
        %1049 = vmatmul.f32.gmra.mxu0 %v1011
        %v1050 = vpop.f32.mrf.mxu0
        %v1051 = vadd.f32 0.0, %v1050
        %1052 = vdwg.mxu0
        %v1053 = vxor.u32 %v1030, 2147483648
        %v1054 = vxor.u32 %v1033, 2147483648
        %v1055 = vxor.u32 %v1036, 2147483648
        %v1056 = vxor.u32 %v1039, 2147483648
        %v1057 = vxor.u32 %v1042, 2147483648
        %v1058 = vxor.u32 %v1045, 2147483648
        %v1059 = vxor.u32 %v1048, 2147483648
        %v1060 = vxor.u32 %v1051, 2147483648
        %v1061 = vmul.f32 %v1053, 1.442695
        %v1062 = vpow.pop %v1061
        %v1063 = vmul.f32 %v1054, 1.442695
        %v1064 = vpow.pop %v1063
        %v1065 = vmul.f32 %v1055, 1.442695
        %v1066 = vpow.pop %v1065
        %v1067 = vmul.f32 %v1056, 1.442695
        %v1068 = vpow.pop %v1067
        %v1069 = vmul.f32 %v1057, 1.442695
        %v1070 = vpow.pop %v1069
        %v1071 = vmul.f32 %v1058, 1.442695
        %v1072 = vpow.pop %v1071
        %v1073 = vmul.f32 %v1059, 1.442695
        %v1074 = vpow.pop %v1073
        %v1075 = vmul.f32 %v1060, 1.442695
        %v1076 = vpow.pop %v1075
        %v1077 = vadd.f32 %v1062, 1.0
        %v1078 = vadd.f32 %v1064, 1.0
        %v1079 = vadd.f32 %v1066, 1.0
        %v1080 = vadd.f32 %v1068, 1.0
        %v1081 = vadd.f32 %v1070, 1.0
        %v1082 = vadd.f32 %v1072, 1.0
        %v1083 = vadd.f32 %v1074, 1.0
        %v1084 = vadd.f32 %v1076, 1.0
        %v1085 = vrcp.pop %v1077
        %v1086 = vmul.f32 %v1077, %v1085
        %v1087 = vsub.f32 1.0, %v1086
        %v1088 = vmul.f32 %v1085, %v1087
        %v1089 = vadd.f32 %v1085, %v1088
        %vm1090 = vweird.f32 %v1077
        %vm1091 = vweird.f32 %v1085
        %vm1092 = vmor %vm1090, %vm1091
        %v1093 = vsel %vm1092, %v1085, %v1089
        %v1094 = vand.u32 2147483647, %v1077
        %vm1095 = vcmp.eq.f32.partialorder %v1094, 8.507059e+37
        %v1096 = vand.u32 %v1077, 2147483648
        %v1097 = vor.u32 1.1754944e-38, %v1096
        %v1098 = vsel %vm1095, %v1097, %v1093
        %v1099 = vmul.f32 1.0, %v1098
        %v1100 = vrcp.pop %v1078
        %v1101 = vmul.f32 %v1078, %v1100
        %v1102 = vsub.f32 1.0, %v1101
        %v1103 = vmul.f32 %v1100, %v1102
        %v1104 = vadd.f32 %v1100, %v1103
        %vm1105 = vweird.f32 %v1078
        %vm1106 = vweird.f32 %v1100
        %vm1107 = vmor %vm1105, %vm1106
        %v1108 = vsel %vm1107, %v1100, %v1104
        %v1109 = vand.u32 2147483647, %v1078
        %vm1110 = vcmp.eq.f32.partialorder %v1109, 8.507059e+37
        %v1111 = vand.u32 %v1078, 2147483648
        %v1112 = vor.u32 1.1754944e-38, %v1111
        %v1113 = vsel %vm1110, %v1112, %v1108
        %v1114 = vmul.f32 1.0, %v1113
        %v1115 = vrcp.pop %v1079
        %v1116 = vmul.f32 %v1079, %v1115
        %v1117 = vsub.f32 1.0, %v1116
        %v1118 = vmul.f32 %v1115, %v1117
        %v1119 = vadd.f32 %v1115, %v1118
        %vm1120 = vweird.f32 %v1079
        %vm1121 = vweird.f32 %v1115
        %vm1122 = vmor %vm1120, %vm1121
        %v1123 = vsel %vm1122, %v1115, %v1119
        %v1124 = vand.u32 2147483647, %v1079
        %vm1125 = vcmp.eq.f32.partialorder %v1124, 8.507059e+37
        %v1126 = vand.u32 %v1079, 2147483648
        %v1127 = vor.u32 1.1754944e-38, %v1126
        %v1128 = vsel %vm1125, %v1127, %v1123
        %v1129 = vmul.f32 1.0, %v1128
        %v1130 = vrcp.pop %v1080
        %v1131 = vmul.f32 %v1080, %v1130
        %v1132 = vsub.f32 1.0, %v1131
        %v1133 = vmul.f32 %v1130, %v1132
        %v1134 = vadd.f32 %v1130, %v1133
        %vm1135 = vweird.f32 %v1080
        %vm1136 = vweird.f32 %v1130
        %vm1137 = vmor %vm1135, %vm1136
        %v1138 = vsel %vm1137, %v1130, %v1134
        %v1139 = vand.u32 2147483647, %v1080
        %vm1140 = vcmp.eq.f32.partialorder %v1139, 8.507059e+37
        %v1141 = vand.u32 %v1080, 2147483648
        %v1142 = vor.u32 1.1754944e-38, %v1141
        %v1143 = vsel %vm1140, %v1142, %v1138
        %v1144 = vmul.f32 1.0, %v1143
        %v1145 = vrcp.pop %v1081
        %v1146 = vmul.f32 %v1081, %v1145
        %v1147 = vsub.f32 1.0, %v1146
        %v1148 = vmul.f32 %v1145, %v1147
        %v1149 = vadd.f32 %v1145, %v1148
        %vm1150 = vweird.f32 %v1081
        %vm1151 = vweird.f32 %v1145
        %vm1152 = vmor %vm1150, %vm1151
        %v1153 = vsel %vm1152, %v1145, %v1149
        %v1154 = vand.u32 2147483647, %v1081
        %vm1155 = vcmp.eq.f32.partialorder %v1154, 8.507059e+37
        %v1156 = vand.u32 %v1081, 2147483648
        %v1157 = vor.u32 1.1754944e-38, %v1156
        %v1158 = vsel %vm1155, %v1157, %v1153
        %v1159 = vmul.f32 1.0, %v1158
        %v1160 = vrcp.pop %v1082
        %v1161 = vmul.f32 %v1082, %v1160
        %v1162 = vsub.f32 1.0, %v1161
        %v1163 = vmul.f32 %v1160, %v1162
        %v1164 = vadd.f32 %v1160, %v1163
        %vm1165 = vweird.f32 %v1082
        %vm1166 = vweird.f32 %v1160
        %vm1167 = vmor %vm1165, %vm1166
        %v1168 = vsel %vm1167, %v1160, %v1164
        %v1169 = vand.u32 2147483647, %v1082
        %vm1170 = vcmp.eq.f32.partialorder %v1169, 8.507059e+37
        %v1171 = vand.u32 %v1082, 2147483648
        %v1172 = vor.u32 1.1754944e-38, %v1171
        %v1173 = vsel %vm1170, %v1172, %v1168
        %v1174 = vmul.f32 1.0, %v1173
        %v1175 = vrcp.pop %v1083
        %v1176 = vmul.f32 %v1083, %v1175
        %v1177 = vsub.f32 1.0, %v1176
        %v1178 = vmul.f32 %v1175, %v1177
        %v1179 = vadd.f32 %v1175, %v1178
        %vm1180 = vweird.f32 %v1083
        %vm1181 = vweird.f32 %v1175
        %vm1182 = vmor %vm1180, %vm1181
        %v1183 = vsel %vm1182, %v1175, %v1179
        %v1184 = vand.u32 2147483647, %v1083
        %vm1185 = vcmp.eq.f32.partialorder %v1184, 8.507059e+37
        %v1186 = vand.u32 %v1083, 2147483648
        %v1187 = vor.u32 1.1754944e-38, %v1186
        %v1188 = vsel %vm1185, %v1187, %v1183
        %v1189 = vmul.f32 1.0, %v1188
        %v1190 = vrcp.pop %v1084
        %v1191 = vmul.f32 %v1084, %v1190
        %v1192 = vsub.f32 1.0, %v1191
        %v1193 = vmul.f32 %v1190, %v1192
        %v1194 = vadd.f32 %v1190, %v1193
        %vm1195 = vweird.f32 %v1084
        %vm1196 = vweird.f32 %v1190
        %vm1197 = vmor %vm1195, %vm1196
        %v1198 = vsel %vm1197, %v1190, %v1194
        %v1199 = vand.u32 2147483647, %v1084
        %vm1200 = vcmp.eq.f32.partialorder %v1199, 8.507059e+37
        %v1201 = vand.u32 %v1084, 2147483648
        %v1202 = vor.u32 1.1754944e-38, %v1201
        %v1203 = vsel %vm1200, %v1202, %v1198
        %v1204 = vmul.f32 1.0, %v1203
        %v1205 = vmul.f32 %v638, %v1099
        %v1206 = vmul.f32 %v639, %v1114
        %v1207 = vmul.f32 %v640, %v1129
        %v1208 = vmul.f32 %v641, %v1144
        %v1209 = vmul.f32 %v642, %v1159
        %v1210 = vmul.f32 %v643, %v1174
        %v1211 = vmul.f32 %v644, %v1189
        %v1212 = vmul.f32 %v645, %v1204
        %v1213 = vpack.c.bf16 %v1206, %v1205
        %v1214 = vpack.c.bf16 %v1208, %v1207
        %v1215 = vpack.c.bf16 %v1210, %v1209
        %v1216 = vpack.c.bf16 %v1212, %v1211
        %v1217 = vld [vmem:[%s11] sm:$0xff]
        %v1218 = vld [vmem:[%s11 + $0x8] sm:$0xff]
        %v1219 = vld [vmem:[%s11 + $0x10] sm:$0xf]
        %v1220 = vld [vmem:[%s11 + $0x14] sm:$0xff]
        %v1221 = vld [vmem:[%s11 + $0x1c] sm:$0xff]
        %v1222 = vld [vmem:[%s11 + $0x24] sm:$0xf]
        %v1223 = vld [vmem:[%s11 + $0x28] sm:$0xff]
        %v1224 = vld [vmem:[%s11 + $0x30] sm:$0xff]
        %v1225 = vld [vmem:[%s11 + $0x38] sm:$0xf]
        %v1226 = vld [vmem:[%s11 + $0x3c] sm:$0xff]
        %v1227 = vld [vmem:[%s11 + $0x44] sm:$0xff]
        %v1228 = vld [vmem:[%s11 + $0x4c] sm:$0xf]
        %v1229 = vld [vmem:[%s11 + $0x50] sm:$0xff]
        %v1230 = vld [vmem:[%s11 + $0x58] sm:$0xff]
        %v1231 = vld [vmem:[%s11 + $0x60] sm:$0xf]
        %v1232 = vld [vmem:[%s11 + $0x64] sm:$0xff]
        %v1233 = vld [vmem:[%s11 + $0x6c] sm:$0xff]
        %v1234 = vld [vmem:[%s11 + $0x74] sm:$0xf]
        %v1235 = vld [vmem:[%s11 + $0x78] sm:$0xff]
        %v1236 = vld [vmem:[%s11 + $0x80] sm:$0xff]
        %v1237 = vld [vmem:[%s11 + $0x88] sm:$0xf]
        %v1238 = vld [vmem:[%s11 + $0x8c] sm:$0xff]
        %v1239 = vld [vmem:[%s11 + $0x94] sm:$0xff]
        %v1240 = vld [vmem:[%s11 + $0x9c] sm:$0xf]
        %v1265 = vunpack.c.l.b16 %v1217
        %v1266 = vunpack.c.h.b16 %v1217
        %v1267 = vunpack.c.l.b16 %v1218
        %v1268 = vunpack.c.h.b16 %v1218
        %v1269 = vunpack.c.l.b16 %v1219
        %v1270 = vunpack.c.l.b16 %v1220
        %v1271 = vunpack.c.h.b16 %v1220
        %v1272 = vunpack.c.l.b16 %v1221
        %v1273 = vunpack.c.h.b16 %v1221
        %v1274 = vunpack.c.l.b16 %v1222
        %v1275 = vunpack.c.l.b16 %v1223
        %v1276 = vunpack.c.h.b16 %v1223
        %v1277 = vunpack.c.l.b16 %v1224
        %v1278 = vunpack.c.h.b16 %v1224
        %v1279 = vunpack.c.l.b16 %v1225
        %v1280 = vunpack.c.l.b16 %v1226
        %v1281 = vunpack.c.h.b16 %v1226
        %v1282 = vunpack.c.l.b16 %v1227
        %v1283 = vunpack.c.h.b16 %v1227
        %v1284 = vunpack.c.l.b16 %v1228
        %v1285 = vunpack.c.l.b16 %v1229
        %v1286 = vunpack.c.h.b16 %v1229
        %v1287 = vunpack.c.l.b16 %v1230
        %v1288 = vunpack.c.h.b16 %v1230
        %v1289 = vunpack.c.l.b16 %v1231
        %v1290 = vunpack.c.l.b16 %v1232
        %v1291 = vunpack.c.h.b16 %v1232
        %v1292 = vunpack.c.l.b16 %v1233
        %v1293 = vunpack.c.h.b16 %v1233
        %v1294 = vunpack.c.l.b16 %v1234
        %v1295 = vunpack.c.l.b16 %v1235
        %v1296 = vunpack.c.h.b16 %v1235
        %v1297 = vunpack.c.l.b16 %v1236
        %v1298 = vunpack.c.h.b16 %v1236
        %v1299 = vunpack.c.l.b16 %v1237
        %v1300 = vunpack.c.l.b16 %v1238
        %v1301 = vunpack.c.h.b16 %v1238
        %v1302 = vunpack.c.l.b16 %v1239
        %v1303 = vunpack.c.h.b16 %v1239
        %v1304 = vunpack.c.l.b16 %v1240
        %v1305 = vpack.c.b16 %v1270, %v1265
        %v1306 = vpack.c.b16 %v1271, %v1266
        %v1307 = vpack.c.b16 %v1272, %v1267
        %v1308 = vpack.c.b16 %v1273, %v1268
        %v1309 = vpack.c.b16 %v1274, %v1269
        %v1310 = vpack.c.b16 %v1280, %v1275
        %v1311 = vpack.c.b16 %v1281, %v1276
        %v1312 = vpack.c.b16 %v1282, %v1277
        %v1313 = vpack.c.b16 %v1283, %v1278
        %v1314 = vpack.c.b16 %v1284, %v1279
        %v1315 = vpack.c.b16 %v1290, %v1285
        %v1316 = vpack.c.b16 %v1291, %v1286
        %v1317 = vpack.c.b16 %v1292, %v1287
        %v1318 = vpack.c.b16 %v1293, %v1288
        %v1319 = vpack.c.b16 %v1294, %v1289
        %v1320 = vpack.c.b16 %v1300, %v1295
        %v1321 = vpack.c.b16 %v1301, %v1296
        %v1322 = vpack.c.b16 %v1302, %v1297
        %v1323 = vpack.c.b16 %v1303, %v1298
        %v1324 = vpack.c.b16 %v1304, %v1299
        %v1346 = vsel %vm646, %v1213, 0
        %v1349 = vsel %vm646, %v1214, 0
        %v1352 = vsel %vm646, %v1215, 0
        %v1355 = vsel %vm646, %v1216, 0
        %1357 = vmatpush.bf16.msra.mxu0 0
        %1358 = vmatpush.bf16.msra.mxu0 0
        %1359 = vmatpush.bf16.msra.mxu0 0
        %1360 = vmatpush.bf16.msra.mxu0 0
        %1361 = vmatpush.bf16.msra.mxu0 %v1320
        %1362 = vmatpush.bf16.msra.mxu0 %v1315
        %1363 = vmatpush.bf16.msra.mxu0 %v1310
        %1364 = vmatpush.bf16.msra.mxu0 %v1305
        %1365 = vmatmul.bf16.gmra.mxu0 %v788
        %v1366 = vpop.f32.mrf.mxu0
        %v1367 = vadd.f32 0.0, %v1366
        %v1368 = vpop.f32.mrf.mxu0
        %v1369 = vadd.f32 0.0, %v1368
        %1370 = vmatmul.bf16.gmra.mxu0 %v791
        %v1371 = vpop.f32.mrf.mxu0
        %v1372 = vadd.f32 0.0, %v1371
        %v1373 = vpop.f32.mrf.mxu0
        %v1374 = vadd.f32 0.0, %v1373
        %1375 = vmatmul.bf16.gmra.mxu0 %v794
        %v1376 = vpop.f32.mrf.mxu0
        %v1377 = vadd.f32 0.0, %v1376
        %v1378 = vpop.f32.mrf.mxu0
        %v1379 = vadd.f32 0.0, %v1378
        %1380 = vmatmul.bf16.gmra.mxu0 %v797
        %v1381 = vpop.f32.mrf.mxu0
        %v1382 = vadd.f32 0.0, %v1381
        %v1383 = vpop.f32.mrf.mxu0
        %v1384 = vadd.f32 0.0, %v1383
        %1385 = vmatmul.bf16.gmra.mxu0 %v1346
        %v1386 = vpop.f32.mrf.mxu0
        %v1387 = vadd.f32 0.0, %v1386
        %v1388 = vpop.f32.mrf.mxu0
        %v1389 = vadd.f32 0.0, %v1388
        %1390 = vmatmul.bf16.gmra.mxu0 %v1349
        %v1391 = vpop.f32.mrf.mxu0
        %v1392 = vadd.f32 0.0, %v1391
        %v1393 = vpop.f32.mrf.mxu0
        %v1394 = vadd.f32 0.0, %v1393
        %1395 = vmatmul.bf16.gmra.mxu0 %v1352
        %v1396 = vpop.f32.mrf.mxu0
        %v1397 = vadd.f32 0.0, %v1396
        %v1398 = vpop.f32.mrf.mxu0
        %v1399 = vadd.f32 0.0, %v1398
        %1400 = vmatmul.bf16.gmra.mxu0 %v1355
        %v1401 = vpop.f32.mrf.mxu0
        %v1402 = vadd.f32 0.0, %v1401
        %v1403 = vpop.f32.mrf.mxu0
        %v1404 = vadd.f32 0.0, %v1403
        %1405 = vdwg.mxu0
        %1406 = vmatpush.bf16.msra.mxu0 0
        %1407 = vmatpush.bf16.msra.mxu0 0
        %1408 = vmatpush.bf16.msra.mxu0 0
        %1409 = vmatpush.bf16.msra.mxu0 0
        %1410 = vmatpush.bf16.msra.mxu0 %v1321
        %1411 = vmatpush.bf16.msra.mxu0 %v1316
        %1412 = vmatpush.bf16.msra.mxu0 %v1311
        %1413 = vmatpush.bf16.msra.mxu0 %v1306
        %1414 = vmatmul.bf16.gmra.mxu0 %v788
        %v1415 = vpop.f32.mrf.mxu0
        %v1416 = vadd.f32 0.0, %v1415
        %v1417 = vpop.f32.mrf.mxu0
        %v1418 = vadd.f32 0.0, %v1417
        %1419 = vmatmul.bf16.gmra.mxu0 %v791
        %v1420 = vpop.f32.mrf.mxu0
        %v1421 = vadd.f32 0.0, %v1420
        %v1422 = vpop.f32.mrf.mxu0
        %v1423 = vadd.f32 0.0, %v1422
        %1424 = vmatmul.bf16.gmra.mxu0 %v794
        %v1425 = vpop.f32.mrf.mxu0
        %v1426 = vadd.f32 0.0, %v1425
        %v1427 = vpop.f32.mrf.mxu0
        %v1428 = vadd.f32 0.0, %v1427
        %1429 = vmatmul.bf16.gmra.mxu0 %v797
        %v1430 = vpop.f32.mrf.mxu0
        %v1431 = vadd.f32 0.0, %v1430
        %v1432 = vpop.f32.mrf.mxu0
        %v1433 = vadd.f32 0.0, %v1432
        %1434 = vmatmul.bf16.gmra.mxu0 %v1346
        %v1435 = vpop.f32.mrf.mxu0
        %v1436 = vadd.f32 0.0, %v1435
        %v1437 = vpop.f32.mrf.mxu0
        %v1438 = vadd.f32 0.0, %v1437
        %1439 = vmatmul.bf16.gmra.mxu0 %v1349
        %v1440 = vpop.f32.mrf.mxu0
        %v1441 = vadd.f32 0.0, %v1440
        %v1442 = vpop.f32.mrf.mxu0
        %v1443 = vadd.f32 0.0, %v1442
        %1444 = vmatmul.bf16.gmra.mxu0 %v1352
        %v1445 = vpop.f32.mrf.mxu0
        %v1446 = vadd.f32 0.0, %v1445
        %v1447 = vpop.f32.mrf.mxu0
        %v1448 = vadd.f32 0.0, %v1447
        %1449 = vmatmul.bf16.gmra.mxu0 %v1355
        %v1450 = vpop.f32.mrf.mxu0
        %v1451 = vadd.f32 0.0, %v1450
        %v1452 = vpop.f32.mrf.mxu0
        %v1453 = vadd.f32 0.0, %v1452
        %1454 = vdwg.mxu0
        %1455 = vmatpush.bf16.msra.mxu0 0
        %1456 = vmatpush.bf16.msra.mxu0 0
        %1457 = vmatpush.bf16.msra.mxu0 0
        %1458 = vmatpush.bf16.msra.mxu0 0
        %1459 = vmatpush.bf16.msra.mxu0 %v1322
        %1460 = vmatpush.bf16.msra.mxu0 %v1317
        %1461 = vmatpush.bf16.msra.mxu0 %v1312
        %1462 = vmatpush.bf16.msra.mxu0 %v1307
        %1463 = vmatmul.bf16.gmra.mxu0 %v788
        %v1464 = vpop.f32.mrf.mxu0
        %v1465 = vadd.f32 0.0, %v1464
        %v1466 = vpop.f32.mrf.mxu0
        %v1467 = vadd.f32 0.0, %v1466
        %1468 = vmatmul.bf16.gmra.mxu0 %v791
        %v1469 = vpop.f32.mrf.mxu0
        %v1470 = vadd.f32 0.0, %v1469
        %v1471 = vpop.f32.mrf.mxu0
        %v1472 = vadd.f32 0.0, %v1471
        %1473 = vmatmul.bf16.gmra.mxu0 %v794
        %v1474 = vpop.f32.mrf.mxu0
        %v1475 = vadd.f32 0.0, %v1474
        %v1476 = vpop.f32.mrf.mxu0
        %v1477 = vadd.f32 0.0, %v1476
        %1478 = vmatmul.bf16.gmra.mxu0 %v797
        %v1479 = vpop.f32.mrf.mxu0
        %v1480 = vadd.f32 0.0, %v1479
        %v1481 = vpop.f32.mrf.mxu0
        %v1482 = vadd.f32 0.0, %v1481
        %1483 = vmatmul.bf16.gmra.mxu0 %v1346
        %v1484 = vpop.f32.mrf.mxu0
        %v1485 = vadd.f32 0.0, %v1484
        %v1486 = vpop.f32.mrf.mxu0
        %v1487 = vadd.f32 0.0, %v1486
        %1488 = vmatmul.bf16.gmra.mxu0 %v1349
        %v1489 = vpop.f32.mrf.mxu0
        %v1490 = vadd.f32 0.0, %v1489
        %v1491 = vpop.f32.mrf.mxu0
        %v1492 = vadd.f32 0.0, %v1491
        %1493 = vmatmul.bf16.gmra.mxu0 %v1352
        %v1494 = vpop.f32.mrf.mxu0
        %v1495 = vadd.f32 0.0, %v1494
        %v1496 = vpop.f32.mrf.mxu0
        %v1497 = vadd.f32 0.0, %v1496
        %1498 = vmatmul.bf16.gmra.mxu0 %v1355
        %v1499 = vpop.f32.mrf.mxu0
        %v1500 = vadd.f32 0.0, %v1499
        %v1501 = vpop.f32.mrf.mxu0
        %v1502 = vadd.f32 0.0, %v1501
        %1503 = vdwg.mxu0
        %1504 = vmatpush.bf16.msra.mxu0 0
        %1505 = vmatpush.bf16.msra.mxu0 0
        %1506 = vmatpush.bf16.msra.mxu0 0
        %1507 = vmatpush.bf16.msra.mxu0 0
        %1508 = vmatpush.bf16.msra.mxu0 %v1323
        %1509 = vmatpush.bf16.msra.mxu0 %v1318
        %1510 = vmatpush.bf16.msra.mxu0 %v1313
        %1511 = vmatpush.bf16.msra.mxu0 %v1308
        %1512 = vmatmul.bf16.gmra.mxu0 %v788
        %v1513 = vpop.f32.mrf.mxu0
        %v1514 = vadd.f32 0.0, %v1513
        %v1515 = vpop.f32.mrf.mxu0
        %v1516 = vadd.f32 0.0, %v1515
        %1517 = vmatmul.bf16.gmra.mxu0 %v791
        %v1518 = vpop.f32.mrf.mxu0
        %v1519 = vadd.f32 0.0, %v1518
        %v1520 = vpop.f32.mrf.mxu0
        %v1521 = vadd.f32 0.0, %v1520
        %1522 = vmatmul.bf16.gmra.mxu0 %v794
        %v1523 = vpop.f32.mrf.mxu0
        %v1524 = vadd.f32 0.0, %v1523
        %v1525 = vpop.f32.mrf.mxu0
        %v1526 = vadd.f32 0.0, %v1525
        %1527 = vmatmul.bf16.gmra.mxu0 %v797
        %v1528 = vpop.f32.mrf.mxu0
        %v1529 = vadd.f32 0.0, %v1528
        %v1530 = vpop.f32.mrf.mxu0
        %v1531 = vadd.f32 0.0, %v1530
        %1532 = vmatmul.bf16.gmra.mxu0 %v1346
        %v1533 = vpop.f32.mrf.mxu0
        %v1534 = vadd.f32 0.0, %v1533
        %v1535 = vpop.f32.mrf.mxu0
        %v1536 = vadd.f32 0.0, %v1535
        %1537 = vmatmul.bf16.gmra.mxu0 %v1349
        %v1538 = vpop.f32.mrf.mxu0
        %v1539 = vadd.f32 0.0, %v1538
        %v1540 = vpop.f32.mrf.mxu0
        %v1541 = vadd.f32 0.0, %v1540
        %1542 = vmatmul.bf16.gmra.mxu0 %v1352
        %v1543 = vpop.f32.mrf.mxu0
        %v1544 = vadd.f32 0.0, %v1543
        %v1545 = vpop.f32.mrf.mxu0
        %v1546 = vadd.f32 0.0, %v1545
        %1547 = vmatmul.bf16.gmra.mxu0 %v1355
        %v1548 = vpop.f32.mrf.mxu0
        %v1549 = vadd.f32 0.0, %v1548
        %v1550 = vpop.f32.mrf.mxu0
        %v1551 = vadd.f32 0.0, %v1550
        %1552 = vdwg.mxu0
        %1553 = vmatpush.bf16.msra.mxu0 0
        %1554 = vmatpush.bf16.msra.mxu0 0
        %1555 = vmatpush.bf16.msra.mxu0 0
        %1556 = vmatpush.bf16.msra.mxu0 0
        %1557 = vmatpush.bf16.msra.mxu0 %v1324
        %1558 = vmatpush.bf16.msra.mxu0 %v1319
        %1559 = vmatpush.bf16.msra.mxu0 %v1314
        %1560 = vmatpush.bf16.msra.mxu0 %v1309
        %1561 = vmatmul.bf16.gmra.mxu0 %v788
        %v1562 = vpop.f32.mrf.mxu0
        %v1563 = vadd.f32 0.0, %v1562
        %v1564 = vpop.f32.mrf.mxu0
        %v1565 = vadd.f32 0.0, %v1564
        %1566 = vmatmul.bf16.gmra.mxu0 %v791
        %v1567 = vpop.f32.mrf.mxu0
        %v1568 = vadd.f32 0.0, %v1567
        %v1569 = vpop.f32.mrf.mxu0
        %v1570 = vadd.f32 0.0, %v1569
        %1571 = vmatmul.bf16.gmra.mxu0 %v794
        %v1572 = vpop.f32.mrf.mxu0
        %v1573 = vadd.f32 0.0, %v1572
        %v1574 = vpop.f32.mrf.mxu0
        %v1575 = vadd.f32 0.0, %v1574
        %1576 = vmatmul.bf16.gmra.mxu0 %v797
        %v1577 = vpop.f32.mrf.mxu0
        %v1578 = vadd.f32 0.0, %v1577
        %v1579 = vpop.f32.mrf.mxu0
        %v1580 = vadd.f32 0.0, %v1579
        %1581 = vmatmul.bf16.gmra.mxu0 %v1346
        %v1582 = vpop.f32.mrf.mxu0
        %v1583 = vadd.f32 0.0, %v1582
        %v1584 = vpop.f32.mrf.mxu0
        %v1585 = vadd.f32 0.0, %v1584
        %1586 = vmatmul.bf16.gmra.mxu0 %v1349
        %v1587 = vpop.f32.mrf.mxu0
        %v1588 = vadd.f32 0.0, %v1587
        %v1589 = vpop.f32.mrf.mxu0
        %v1590 = vadd.f32 0.0, %v1589
        %1591 = vmatmul.bf16.gmra.mxu0 %v1352
        %v1592 = vpop.f32.mrf.mxu0
        %v1593 = vadd.f32 0.0, %v1592
        %v1594 = vpop.f32.mrf.mxu0
        %v1595 = vadd.f32 0.0, %v1594
        %1596 = vmatmul.bf16.gmra.mxu0 %v1355
        %v1597 = vpop.f32.mrf.mxu0
        %v1598 = vadd.f32 0.0, %v1597
        %v1599 = vpop.f32.mrf.mxu0
        %v1600 = vadd.f32 0.0, %v1599
        %1601 = vdwg.mxu0
        %v1602 = vld [vmem:[#allocation6] sm:$0xff]
        %v1603 = vld [vmem:[#allocation6 + $0x8] sm:$0xff]
        %v1604 = vld [vmem:[#allocation6 + $0x10] sm:$0xff]
        %v1605 = vld [vmem:[#allocation6 + $0x18] sm:$0xff]
        %v1606 = vld [vmem:[#allocation6 + $0x20] sm:$0xff]
        %v1607 = vld [vmem:[#allocation6 + $0x28] sm:$0xff]
        %v1608 = vld [vmem:[#allocation6 + $0x30] sm:$0xff]
        %v1609 = vld [vmem:[#allocation6 + $0x38] sm:$0xff]
        %v1610 = vld [vmem:[#allocation6 + $0x40] sm:$0xff]
        %v1611 = vld [vmem:[#allocation6 + $0x48] sm:$0xff]
        %v1612 = vld [vmem:[#allocation6 + $0x50] sm:$0xff]
        %v1613 = vld [vmem:[#allocation6 + $0x58] sm:$0xff]
        %v1614 = vld [vmem:[#allocation6 + $0x60] sm:$0xff]
        %v1615 = vld [vmem:[#allocation6 + $0x68] sm:$0xff]
        %v1616 = vld [vmem:[#allocation6 + $0x70] sm:$0xff]
        %v1617 = vld [vmem:[#allocation6 + $0x78] sm:$0xff]
        %s1618 = scalar_lea.vmem [#allocation6], 128
        %v1619 = vld [vmem:[%s1618] sm:$0xff]
        %v1620 = vld [vmem:[%s1618 + $0x8] sm:$0xff]
        %v1621 = vld [vmem:[%s1618 + $0x10] sm:$0xff]
        %v1622 = vld [vmem:[%s1618 + $0x18] sm:$0xff]
        %v1623 = vld [vmem:[%s1618 + $0x20] sm:$0xff]
        %v1624 = vld [vmem:[%s1618 + $0x28] sm:$0xff]
        %v1625 = vld [vmem:[%s1618 + $0x30] sm:$0xff]
        %v1626 = vld [vmem:[%s1618 + $0x38] sm:$0xff]
        %v1627 = vld [vmem:[%s1618 + $0x40] sm:$0xff]
        %v1628 = vld [vmem:[%s1618 + $0x48] sm:$0xff]
        %v1629 = vld [vmem:[%s1618 + $0x50] sm:$0xff]
        %v1630 = vld [vmem:[%s1618 + $0x58] sm:$0xff]
        %v1631 = vld [vmem:[%s1618 + $0x60] sm:$0xff]
        %v1632 = vld [vmem:[%s1618 + $0x68] sm:$0xff]
        %v1633 = vld [vmem:[%s1618 + $0x70] sm:$0xff]
        %v1634 = vld [vmem:[%s1618 + $0x78] sm:$0xff]
        %1651 = vrot.lane.b32.xlu0 %v1367, 64
        %v1652 = vpop.permute.xlu0 %1651
        %1653 = vrot.lane.b32.xlu0 %v1369, 64
        %v1654 = vpop.permute.xlu0 %1653
        %1655 = vrot.lane.b32.xlu0 %v1372, 64
        %v1656 = vpop.permute.xlu0 %1655
        %1657 = vrot.lane.b32.xlu0 %v1374, 64
        %v1658 = vpop.permute.xlu0 %1657
        %1659 = vrot.lane.b32.xlu0 %v1377, 64
        %v1660 = vpop.permute.xlu0 %1659
        %1661 = vrot.lane.b32.xlu0 %v1379, 64
        %v1662 = vpop.permute.xlu0 %1661
        %1663 = vrot.lane.b32.xlu0 %v1382, 64
        %v1664 = vpop.permute.xlu0 %1663
        %1665 = vrot.lane.b32.xlu0 %v1384, 64
        %v1666 = vpop.permute.xlu0 %1665
        %1667 = vrot.lane.b32.xlu0 %v1387, 64
        %v1668 = vpop.permute.xlu0 %1667
        %1669 = vrot.lane.b32.xlu0 %v1389, 64
        %v1670 = vpop.permute.xlu0 %1669
        %1671 = vrot.lane.b32.xlu0 %v1392, 64
        %v1672 = vpop.permute.xlu0 %1671
        %1673 = vrot.lane.b32.xlu0 %v1394, 64
        %v1674 = vpop.permute.xlu0 %1673
        %1675 = vrot.lane.b32.xlu0 %v1397, 64
        %v1676 = vpop.permute.xlu0 %1675
        %1677 = vrot.lane.b32.xlu0 %v1399, 64
        %v1678 = vpop.permute.xlu0 %1677
        %1679 = vrot.lane.b32.xlu0 %v1402, 64
        %v1680 = vpop.permute.xlu0 %1679
        %1681 = vrot.lane.b32.xlu0 %v1404, 64
        %v1682 = vpop.permute.xlu0 %1681
        %1699 = vmatpush.msra.mxu0 %v1682
        %1700 = vmatpush.msra.mxu0 %v1680
        %1701 = vmatpush.msra.mxu0 %v1678
        %1702 = vmatpush.msra.mxu0 %v1676
        %1703 = vmatpush.msra.mxu0 %v1674
        %1704 = vmatpush.msra.mxu0 %v1672
        %1705 = vmatpush.msra.mxu0 %v1670
        %1706 = vmatpush.msra.mxu0 %v1668
        %1707 = vmatpush.msra.mxu0 %v1666
        %1708 = vmatpush.msra.mxu0 %v1664
        %1709 = vmatpush.msra.mxu0 %v1662
        %1710 = vmatpush.msra.mxu0 %v1660
        %1711 = vmatpush.msra.mxu0 %v1658
        %1712 = vmatpush.msra.mxu0 %v1656
        %1713 = vmatpush.msra.mxu0 %v1654
        %1714 = vmatpush.msra.mxu0 %v1652
        %1715 = vmatmul.f32.gmra.mxu0 %v1619
        %v1716 = vpop.f32.mrf.mxu0
        %v1717 = vadd.f32 0.0, %v1716
        %1718 = vmatmul.f32.gmra.mxu0 %v1620
        %v1719 = vpop.f32.mrf.mxu0
        %v1720 = vadd.f32 0.0, %v1719
        %1721 = vmatmul.f32.gmra.mxu0 %v1621
        %v1722 = vpop.f32.mrf.mxu0
        %v1723 = vadd.f32 0.0, %v1722
        %1724 = vmatmul.f32.gmra.mxu0 %v1622
        %v1725 = vpop.f32.mrf.mxu0
        %v1726 = vadd.f32 0.0, %v1725
        %1727 = vmatmul.f32.gmra.mxu0 %v1623
        %v1728 = vpop.f32.mrf.mxu0
        %v1729 = vadd.f32 0.0, %v1728
        %1730 = vmatmul.f32.gmra.mxu0 %v1624
        %v1731 = vpop.f32.mrf.mxu0
        %v1732 = vadd.f32 0.0, %v1731
        %1733 = vmatmul.f32.gmra.mxu0 %v1625
        %v1734 = vpop.f32.mrf.mxu0
        %v1735 = vadd.f32 0.0, %v1734
        %1736 = vmatmul.f32.gmra.mxu0 %v1626
        %v1737 = vpop.f32.mrf.mxu0
        %v1738 = vadd.f32 0.0, %v1737
        %1739 = vmatmul.f32.gmra.mxu0 %v1627
        %v1740 = vpop.f32.mrf.mxu0
        %v1741 = vadd.f32 0.0, %v1740
        %1742 = vmatmul.f32.gmra.mxu0 %v1628
        %v1743 = vpop.f32.mrf.mxu0
        %v1744 = vadd.f32 0.0, %v1743
        %1745 = vmatmul.f32.gmra.mxu0 %v1629
        %v1746 = vpop.f32.mrf.mxu0
        %v1747 = vadd.f32 0.0, %v1746
        %1748 = vmatmul.f32.gmra.mxu0 %v1630
        %v1749 = vpop.f32.mrf.mxu0
        %v1750 = vadd.f32 0.0, %v1749
        %1751 = vmatmul.f32.gmra.mxu0 %v1631
        %v1752 = vpop.f32.mrf.mxu0
        %v1753 = vadd.f32 0.0, %v1752
        %1754 = vmatmul.f32.gmra.mxu0 %v1632
        %v1755 = vpop.f32.mrf.mxu0
        %v1756 = vadd.f32 0.0, %v1755
        %1757 = vmatmul.f32.gmra.mxu0 %v1633
        %v1758 = vpop.f32.mrf.mxu0
        %v1759 = vadd.f32 0.0, %v1758
        %1760 = vmatmul.f32.gmra.mxu0 %v1634
        %v1761 = vpop.f32.mrf.mxu0
        %v1762 = vadd.f32 0.0, %v1761
        %1763 = vdwg.mxu0
        %1764 = vmatpush.msra.mxu0 %v1404
        %1765 = vmatpush.msra.mxu0 %v1402
        %1766 = vmatpush.msra.mxu0 %v1399
        %1767 = vmatpush.msra.mxu0 %v1397
        %1768 = vmatpush.msra.mxu0 %v1394
        %1769 = vmatpush.msra.mxu0 %v1392
        %1770 = vmatpush.msra.mxu0 %v1389
        %1771 = vmatpush.msra.mxu0 %v1387
        %1772 = vmatpush.msra.mxu0 %v1384
        %1773 = vmatpush.msra.mxu0 %v1382
        %1774 = vmatpush.msra.mxu0 %v1379
        %1775 = vmatpush.msra.mxu0 %v1377
        %1776 = vmatpush.msra.mxu0 %v1374
        %1777 = vmatpush.msra.mxu0 %v1372
        %1778 = vmatpush.msra.mxu0 %v1369
        %1779 = vmatpush.msra.mxu0 %v1367
        %1780 = vmatmul.f32.gmra.mxu0 %v1602
        %v1781 = vpop.f32.mrf.mxu0
        %v1782 = vadd.f32 %v1717, %v1781
        %1783 = vmatmul.f32.gmra.mxu0 %v1603
        %v1784 = vpop.f32.mrf.mxu0
        %v1785 = vadd.f32 %v1720, %v1784
        %1786 = vmatmul.f32.gmra.mxu0 %v1604
        %v1787 = vpop.f32.mrf.mxu0
        %v1788 = vadd.f32 %v1723, %v1787
        %1789 = vmatmul.f32.gmra.mxu0 %v1605
        %v1790 = vpop.f32.mrf.mxu0
        %v1791 = vadd.f32 %v1726, %v1790
        %1792 = vmatmul.f32.gmra.mxu0 %v1606
        %v1793 = vpop.f32.mrf.mxu0
        %v1794 = vadd.f32 %v1729, %v1793
        %1795 = vmatmul.f32.gmra.mxu0 %v1607
        %v1796 = vpop.f32.mrf.mxu0
        %v1797 = vadd.f32 %v1732, %v1796
        %1798 = vmatmul.f32.gmra.mxu0 %v1608
        %v1799 = vpop.f32.mrf.mxu0
        %v1800 = vadd.f32 %v1735, %v1799
        %1801 = vmatmul.f32.gmra.mxu0 %v1609
        %v1802 = vpop.f32.mrf.mxu0
        %v1803 = vadd.f32 %v1738, %v1802
        %1804 = vmatmul.f32.gmra.mxu0 %v1610
        %v1805 = vpop.f32.mrf.mxu0
        %v1806 = vadd.f32 %v1741, %v1805
        %1807 = vmatmul.f32.gmra.mxu0 %v1611
        %v1808 = vpop.f32.mrf.mxu0
        %v1809 = vadd.f32 %v1744, %v1808
        %1810 = vmatmul.f32.gmra.mxu0 %v1612
        %v1811 = vpop.f32.mrf.mxu0
        %v1812 = vadd.f32 %v1747, %v1811
        %1813 = vmatmul.f32.gmra.mxu0 %v1613
        %v1814 = vpop.f32.mrf.mxu0
        %v1815 = vadd.f32 %v1750, %v1814
        %1816 = vmatmul.f32.gmra.mxu0 %v1614
        %v1817 = vpop.f32.mrf.mxu0
        %v1818 = vadd.f32 %v1753, %v1817
        %1819 = vmatmul.f32.gmra.mxu0 %v1615
        %v1820 = vpop.f32.mrf.mxu0
        %v1821 = vadd.f32 %v1756, %v1820
        %1822 = vmatmul.f32.gmra.mxu0 %v1616
        %v1823 = vpop.f32.mrf.mxu0
        %v1824 = vadd.f32 %v1759, %v1823
        %1825 = vmatmul.f32.gmra.mxu0 %v1617
        %v1826 = vpop.f32.mrf.mxu0
        %v1827 = vadd.f32 %v1762, %v1826
        %1828 = vdwg.mxu0
        %s1829 = scalar_lea.vmem [#allocation6], 256
        %v1830 = vld [vmem:[%s1829] sm:$0xff]
        %v1831 = vld [vmem:[%s1829 + $0x8] sm:$0xff]
        %v1832 = vld [vmem:[%s1829 + $0x10] sm:$0xff]
        %v1833 = vld [vmem:[%s1829 + $0x18] sm:$0xff]
        %v1834 = vld [vmem:[%s1829 + $0x20] sm:$0xff]
        %v1835 = vld [vmem:[%s1829 + $0x28] sm:$0xff]
        %v1836 = vld [vmem:[%s1829 + $0x30] sm:$0xff]
        %v1837 = vld [vmem:[%s1829 + $0x38] sm:$0xff]
        %v1838 = vld [vmem:[%s1829 + $0x40] sm:$0xff]
        %v1839 = vld [vmem:[%s1829 + $0x48] sm:$0xff]
        %v1840 = vld [vmem:[%s1829 + $0x50] sm:$0xff]
        %v1841 = vld [vmem:[%s1829 + $0x58] sm:$0xff]
        %v1842 = vld [vmem:[%s1829 + $0x60] sm:$0xff]
        %v1843 = vld [vmem:[%s1829 + $0x68] sm:$0xff]
        %v1844 = vld [vmem:[%s1829 + $0x70] sm:$0xff]
        %v1845 = vld [vmem:[%s1829 + $0x78] sm:$0xff]
        %1846 = vmatpush.msra.mxu0 %v1453
        %1847 = vmatpush.msra.mxu0 %v1451
        %1848 = vmatpush.msra.mxu0 %v1448
        %1849 = vmatpush.msra.mxu0 %v1446
        %1850 = vmatpush.msra.mxu0 %v1443
        %1851 = vmatpush.msra.mxu0 %v1441
        %1852 = vmatpush.msra.mxu0 %v1438
        %1853 = vmatpush.msra.mxu0 %v1436
        %1854 = vmatpush.msra.mxu0 %v1433
        %1855 = vmatpush.msra.mxu0 %v1431
        %1856 = vmatpush.msra.mxu0 %v1428
        %1857 = vmatpush.msra.mxu0 %v1426
        %1858 = vmatpush.msra.mxu0 %v1423
        %1859 = vmatpush.msra.mxu0 %v1421
        %1860 = vmatpush.msra.mxu0 %v1418
        %1861 = vmatpush.msra.mxu0 %v1416
        %1862 = vmatmul.f32.gmra.mxu0 %v1830
        %v1863 = vpop.f32.mrf.mxu0
        %v1864 = vadd.f32 0.0, %v1863
        %1865 = vmatmul.f32.gmra.mxu0 %v1831
        %v1866 = vpop.f32.mrf.mxu0
        %v1867 = vadd.f32 0.0, %v1866
        %1868 = vmatmul.f32.gmra.mxu0 %v1832
        %v1869 = vpop.f32.mrf.mxu0
        %v1870 = vadd.f32 0.0, %v1869
        %1871 = vmatmul.f32.gmra.mxu0 %v1833
        %v1872 = vpop.f32.mrf.mxu0
        %v1873 = vadd.f32 0.0, %v1872
        %1874 = vmatmul.f32.gmra.mxu0 %v1834
        %v1875 = vpop.f32.mrf.mxu0
        %v1876 = vadd.f32 0.0, %v1875
        %1877 = vmatmul.f32.gmra.mxu0 %v1835
        %v1878 = vpop.f32.mrf.mxu0
        %v1879 = vadd.f32 0.0, %v1878
        %1880 = vmatmul.f32.gmra.mxu0 %v1836
        %v1881 = vpop.f32.mrf.mxu0
        %v1882 = vadd.f32 0.0, %v1881
        %1883 = vmatmul.f32.gmra.mxu0 %v1837
        %v1884 = vpop.f32.mrf.mxu0
        %v1885 = vadd.f32 0.0, %v1884
        %1886 = vmatmul.f32.gmra.mxu0 %v1838
        %v1887 = vpop.f32.mrf.mxu0
        %v1888 = vadd.f32 0.0, %v1887
        %1889 = vmatmul.f32.gmra.mxu0 %v1839
        %v1890 = vpop.f32.mrf.mxu0
        %v1891 = vadd.f32 0.0, %v1890
        %1892 = vmatmul.f32.gmra.mxu0 %v1840
        %v1893 = vpop.f32.mrf.mxu0
        %v1894 = vadd.f32 0.0, %v1893
        %1895 = vmatmul.f32.gmra.mxu0 %v1841
        %v1896 = vpop.f32.mrf.mxu0
        %v1897 = vadd.f32 0.0, %v1896
        %1898 = vmatmul.f32.gmra.mxu0 %v1842
        %v1899 = vpop.f32.mrf.mxu0
        %v1900 = vadd.f32 0.0, %v1899
        %1901 = vmatmul.f32.gmra.mxu0 %v1843
        %v1902 = vpop.f32.mrf.mxu0
        %v1903 = vadd.f32 0.0, %v1902
        %1904 = vmatmul.f32.gmra.mxu0 %v1844
        %v1905 = vpop.f32.mrf.mxu0
        %v1906 = vadd.f32 0.0, %v1905
        %1907 = vmatmul.f32.gmra.mxu0 %v1845
        %v1908 = vpop.f32.mrf.mxu0
        %v1909 = vadd.f32 0.0, %v1908
        %1910 = vdwg.mxu0
        %v1911 = vadd.f32 %v1782, %v1864
        %v1912 = vadd.f32 %v1785, %v1867
        %v1913 = vadd.f32 %v1788, %v1870
        %v1914 = vadd.f32 %v1791, %v1873
        %v1915 = vadd.f32 %v1794, %v1876
        %v1916 = vadd.f32 %v1797, %v1879
        %v1917 = vadd.f32 %v1800, %v1882
        %v1918 = vadd.f32 %v1803, %v1885
        %v1919 = vadd.f32 %v1806, %v1888
        %v1920 = vadd.f32 %v1809, %v1891
        %v1921 = vadd.f32 %v1812, %v1894
        %v1922 = vadd.f32 %v1815, %v1897
        %v1923 = vadd.f32 %v1818, %v1900
        %v1924 = vadd.f32 %v1821, %v1903
        %v1925 = vadd.f32 %v1824, %v1906
        %v1926 = vadd.f32 %v1827, %v1909
        %s1927 = scalar_lea.vmem [#allocation6], 384
        %v1928 = vld [vmem:[%s1927] sm:$0xff]
        %v1929 = vld [vmem:[%s1927 + $0x8] sm:$0xff]
        %v1930 = vld [vmem:[%s1927 + $0x10] sm:$0xff]
        %v1931 = vld [vmem:[%s1927 + $0x18] sm:$0xff]
        %v1932 = vld [vmem:[%s1927 + $0x20] sm:$0xff]
        %v1933 = vld [vmem:[%s1927 + $0x28] sm:$0xff]
        %v1934 = vld [vmem:[%s1927 + $0x30] sm:$0xff]
        %v1935 = vld [vmem:[%s1927 + $0x38] sm:$0xff]
        %v1936 = vld [vmem:[%s1927 + $0x40] sm:$0xff]
        %v1937 = vld [vmem:[%s1927 + $0x48] sm:$0xff]
        %v1938 = vld [vmem:[%s1927 + $0x50] sm:$0xff]
        %v1939 = vld [vmem:[%s1927 + $0x58] sm:$0xff]
        %v1940 = vld [vmem:[%s1927 + $0x60] sm:$0xff]
        %v1941 = vld [vmem:[%s1927 + $0x68] sm:$0xff]
        %v1942 = vld [vmem:[%s1927 + $0x70] sm:$0xff]
        %v1943 = vld [vmem:[%s1927 + $0x78] sm:$0xff]
        %1960 = vrot.lane.b32.xlu0 %v1416, 64
        %v1961 = vpop.permute.xlu0 %1960
        %1962 = vrot.lane.b32.xlu0 %v1418, 64
        %v1963 = vpop.permute.xlu0 %1962
        %1964 = vrot.lane.b32.xlu0 %v1421, 64
        %v1965 = vpop.permute.xlu0 %1964
        %1966 = vrot.lane.b32.xlu0 %v1423, 64
        %v1967 = vpop.permute.xlu0 %1966
        %1968 = vrot.lane.b32.xlu0 %v1426, 64
        %v1969 = vpop.permute.xlu0 %1968
        %1970 = vrot.lane.b32.xlu0 %v1428, 64
        %v1971 = vpop.permute.xlu0 %1970
        %1972 = vrot.lane.b32.xlu0 %v1431, 64
        %v1973 = vpop.permute.xlu0 %1972
        %1974 = vrot.lane.b32.xlu0 %v1433, 64
        %v1975 = vpop.permute.xlu0 %1974
        %1976 = vrot.lane.b32.xlu0 %v1436, 64
        %v1977 = vpop.permute.xlu0 %1976
        %1978 = vrot.lane.b32.xlu0 %v1438, 64
        %v1979 = vpop.permute.xlu0 %1978
        %1980 = vrot.lane.b32.xlu0 %v1441, 64
        %v1981 = vpop.permute.xlu0 %1980
        %1982 = vrot.lane.b32.xlu0 %v1443, 64
        %v1983 = vpop.permute.xlu0 %1982
        %1984 = vrot.lane.b32.xlu0 %v1446, 64
        %v1985 = vpop.permute.xlu0 %1984
        %1986 = vrot.lane.b32.xlu0 %v1448, 64
        %v1987 = vpop.permute.xlu0 %1986
        %1988 = vrot.lane.b32.xlu0 %v1451, 64
        %v1989 = vpop.permute.xlu0 %1988
        %1990 = vrot.lane.b32.xlu0 %v1453, 64
        %v1991 = vpop.permute.xlu0 %1990
        %2008 = vmatpush.msra.mxu0 %v1991
        %2009 = vmatpush.msra.mxu0 %v1989
        %2010 = vmatpush.msra.mxu0 %v1987
        %2011 = vmatpush.msra.mxu0 %v1985
        %2012 = vmatpush.msra.mxu0 %v1983
        %2013 = vmatpush.msra.mxu0 %v1981
        %2014 = vmatpush.msra.mxu0 %v1979
        %2015 = vmatpush.msra.mxu0 %v1977
        %2016 = vmatpush.msra.mxu0 %v1975
        %2017 = vmatpush.msra.mxu0 %v1973
        %2018 = vmatpush.msra.mxu0 %v1971
        %2019 = vmatpush.msra.mxu0 %v1969
        %2020 = vmatpush.msra.mxu0 %v1967
        %2021 = vmatpush.msra.mxu0 %v1965
        %2022 = vmatpush.msra.mxu0 %v1963
        %2023 = vmatpush.msra.mxu0 %v1961
        %2024 = vmatmul.f32.gmra.mxu0 %v1928
        %v2025 = vpop.f32.mrf.mxu0
        %v2026 = vadd.f32 0.0, %v2025
        %2027 = vmatmul.f32.gmra.mxu0 %v1929
        %v2028 = vpop.f32.mrf.mxu0
        %v2029 = vadd.f32 0.0, %v2028
        %2030 = vmatmul.f32.gmra.mxu0 %v1930
        %v2031 = vpop.f32.mrf.mxu0
        %v2032 = vadd.f32 0.0, %v2031
        %2033 = vmatmul.f32.gmra.mxu0 %v1931
        %v2034 = vpop.f32.mrf.mxu0
        %v2035 = vadd.f32 0.0, %v2034
        %2036 = vmatmul.f32.gmra.mxu0 %v1932
        %v2037 = vpop.f32.mrf.mxu0
        %v2038 = vadd.f32 0.0, %v2037
        %2039 = vmatmul.f32.gmra.mxu0 %v1933
        %v2040 = vpop.f32.mrf.mxu0
        %v2041 = vadd.f32 0.0, %v2040
        %2042 = vmatmul.f32.gmra.mxu0 %v1934
        %v2043 = vpop.f32.mrf.mxu0
        %v2044 = vadd.f32 0.0, %v2043
        %2045 = vmatmul.f32.gmra.mxu0 %v1935
        %v2046 = vpop.f32.mrf.mxu0
        %v2047 = vadd.f32 0.0, %v2046
        %2048 = vmatmul.f32.gmra.mxu0 %v1936
        %v2049 = vpop.f32.mrf.mxu0
        %v2050 = vadd.f32 0.0, %v2049
        %2051 = vmatmul.f32.gmra.mxu0 %v1937
        %v2052 = vpop.f32.mrf.mxu0
        %v2053 = vadd.f32 0.0, %v2052
        %2054 = vmatmul.f32.gmra.mxu0 %v1938
        %v2055 = vpop.f32.mrf.mxu0
        %v2056 = vadd.f32 0.0, %v2055
        %2057 = vmatmul.f32.gmra.mxu0 %v1939
        %v2058 = vpop.f32.mrf.mxu0
        %v2059 = vadd.f32 0.0, %v2058
        %2060 = vmatmul.f32.gmra.mxu0 %v1940
        %v2061 = vpop.f32.mrf.mxu0
        %v2062 = vadd.f32 0.0, %v2061
        %2063 = vmatmul.f32.gmra.mxu0 %v1941
        %v2064 = vpop.f32.mrf.mxu0
        %v2065 = vadd.f32 0.0, %v2064
        %2066 = vmatmul.f32.gmra.mxu0 %v1942
        %v2067 = vpop.f32.mrf.mxu0
        %v2068 = vadd.f32 0.0, %v2067
        %2069 = vmatmul.f32.gmra.mxu0 %v1943
        %v2070 = vpop.f32.mrf.mxu0
        %v2071 = vadd.f32 0.0, %v2070
        %2072 = vdwg.mxu0
        %v2073 = vadd.f32 %v1911, %v2026
        %v2074 = vadd.f32 %v1912, %v2029
        %v2075 = vadd.f32 %v1913, %v2032
        %v2076 = vadd.f32 %v1914, %v2035
        %v2077 = vadd.f32 %v1915, %v2038
        %v2078 = vadd.f32 %v1916, %v2041
        %v2079 = vadd.f32 %v1917, %v2044
        %v2080 = vadd.f32 %v1918, %v2047
        %v2081 = vadd.f32 %v1919, %v2050
        %v2082 = vadd.f32 %v1920, %v2053
        %v2083 = vadd.f32 %v1921, %v2056
        %v2084 = vadd.f32 %v1922, %v2059
        %v2085 = vadd.f32 %v1923, %v2062
        %v2086 = vadd.f32 %v1924, %v2065
        %v2087 = vadd.f32 %v1925, %v2068
        %v2088 = vadd.f32 %v1926, %v2071
        %s2089 = scalar_lea.vmem [#allocation6], 512
        %v2090 = vld [vmem:[%s2089] sm:$0xff]
        %v2091 = vld [vmem:[%s2089 + $0x8] sm:$0xff]
        %v2092 = vld [vmem:[%s2089 + $0x10] sm:$0xff]
        %v2093 = vld [vmem:[%s2089 + $0x18] sm:$0xff]
        %v2094 = vld [vmem:[%s2089 + $0x20] sm:$0xff]
        %v2095 = vld [vmem:[%s2089 + $0x28] sm:$0xff]
        %v2096 = vld [vmem:[%s2089 + $0x30] sm:$0xff]
        %v2097 = vld [vmem:[%s2089 + $0x38] sm:$0xff]
        %v2098 = vld [vmem:[%s2089 + $0x40] sm:$0xff]
        %v2099 = vld [vmem:[%s2089 + $0x48] sm:$0xff]
        %v2100 = vld [vmem:[%s2089 + $0x50] sm:$0xff]
        %v2101 = vld [vmem:[%s2089 + $0x58] sm:$0xff]
        %v2102 = vld [vmem:[%s2089 + $0x60] sm:$0xff]
        %v2103 = vld [vmem:[%s2089 + $0x68] sm:$0xff]
        %v2104 = vld [vmem:[%s2089 + $0x70] sm:$0xff]
        %v2105 = vld [vmem:[%s2089 + $0x78] sm:$0xff]
        %2106 = vmatpush.msra.mxu0 %v1502
        %2107 = vmatpush.msra.mxu0 %v1500
        %2108 = vmatpush.msra.mxu0 %v1497
        %2109 = vmatpush.msra.mxu0 %v1495
        %2110 = vmatpush.msra.mxu0 %v1492
        %2111 = vmatpush.msra.mxu0 %v1490
        %2112 = vmatpush.msra.mxu0 %v1487
        %2113 = vmatpush.msra.mxu0 %v1485
        %2114 = vmatpush.msra.mxu0 %v1482
        %2115 = vmatpush.msra.mxu0 %v1480
        %2116 = vmatpush.msra.mxu0 %v1477
        %2117 = vmatpush.msra.mxu0 %v1475
        %2118 = vmatpush.msra.mxu0 %v1472
        %2119 = vmatpush.msra.mxu0 %v1470
        %2120 = vmatpush.msra.mxu0 %v1467
        %2121 = vmatpush.msra.mxu0 %v1465
        %2122 = vmatmul.f32.gmra.mxu0 %v2090
        %v2123 = vpop.f32.mrf.mxu0
        %v2124 = vadd.f32 0.0, %v2123
        %2125 = vmatmul.f32.gmra.mxu0 %v2091
        %v2126 = vpop.f32.mrf.mxu0
        %v2127 = vadd.f32 0.0, %v2126
        %2128 = vmatmul.f32.gmra.mxu0 %v2092
        %v2129 = vpop.f32.mrf.mxu0
        %v2130 = vadd.f32 0.0, %v2129
        %2131 = vmatmul.f32.gmra.mxu0 %v2093
        %v2132 = vpop.f32.mrf.mxu0
        %v2133 = vadd.f32 0.0, %v2132
        %2134 = vmatmul.f32.gmra.mxu0 %v2094
        %v2135 = vpop.f32.mrf.mxu0
        %v2136 = vadd.f32 0.0, %v2135
        %2137 = vmatmul.f32.gmra.mxu0 %v2095
        %v2138 = vpop.f32.mrf.mxu0
        %v2139 = vadd.f32 0.0, %v2138
        %2140 = vmatmul.f32.gmra.mxu0 %v2096
        %v2141 = vpop.f32.mrf.mxu0
        %v2142 = vadd.f32 0.0, %v2141
        %2143 = vmatmul.f32.gmra.mxu0 %v2097
        %v2144 = vpop.f32.mrf.mxu0
        %v2145 = vadd.f32 0.0, %v2144
        %2146 = vmatmul.f32.gmra.mxu0 %v2098
        %v2147 = vpop.f32.mrf.mxu0
        %v2148 = vadd.f32 0.0, %v2147
        %2149 = vmatmul.f32.gmra.mxu0 %v2099
        %v2150 = vpop.f32.mrf.mxu0
        %v2151 = vadd.f32 0.0, %v2150
        %2152 = vmatmul.f32.gmra.mxu0 %v2100
        %v2153 = vpop.f32.mrf.mxu0
        %v2154 = vadd.f32 0.0, %v2153
        %2155 = vmatmul.f32.gmra.mxu0 %v2101
        %v2156 = vpop.f32.mrf.mxu0
        %v2157 = vadd.f32 0.0, %v2156
        %2158 = vmatmul.f32.gmra.mxu0 %v2102
        %v2159 = vpop.f32.mrf.mxu0
        %v2160 = vadd.f32 0.0, %v2159
        %2161 = vmatmul.f32.gmra.mxu0 %v2103
        %v2162 = vpop.f32.mrf.mxu0
        %v2163 = vadd.f32 0.0, %v2162
        %2164 = vmatmul.f32.gmra.mxu0 %v2104
        %v2165 = vpop.f32.mrf.mxu0
        %v2166 = vadd.f32 0.0, %v2165
        %2167 = vmatmul.f32.gmra.mxu0 %v2105
        %v2168 = vpop.f32.mrf.mxu0
        %v2169 = vadd.f32 0.0, %v2168
        %2170 = vdwg.mxu0
        %v2171 = vadd.f32 %v2073, %v2124
        %v2172 = vadd.f32 %v2074, %v2127
        %v2173 = vadd.f32 %v2075, %v2130
        %v2174 = vadd.f32 %v2076, %v2133
        %v2175 = vadd.f32 %v2077, %v2136
        %v2176 = vadd.f32 %v2078, %v2139
        %v2177 = vadd.f32 %v2079, %v2142
        %v2178 = vadd.f32 %v2080, %v2145
        %v2179 = vadd.f32 %v2081, %v2148
        %v2180 = vadd.f32 %v2082, %v2151
        %v2181 = vadd.f32 %v2083, %v2154
        %v2182 = vadd.f32 %v2084, %v2157
        %v2183 = vadd.f32 %v2085, %v2160
        %v2184 = vadd.f32 %v2086, %v2163
        %v2185 = vadd.f32 %v2087, %v2166
        %v2186 = vadd.f32 %v2088, %v2169
        %s2187 = scalar_lea.vmem [#allocation6], 640
        %v2188 = vld [vmem:[%s2187] sm:$0xff]
        %v2189 = vld [vmem:[%s2187 + $0x8] sm:$0xff]
        %v2190 = vld [vmem:[%s2187 + $0x10] sm:$0xff]
        %v2191 = vld [vmem:[%s2187 + $0x18] sm:$0xff]
        %v2192 = vld [vmem:[%s2187 + $0x20] sm:$0xff]
        %v2193 = vld [vmem:[%s2187 + $0x28] sm:$0xff]
        %v2194 = vld [vmem:[%s2187 + $0x30] sm:$0xff]
        %v2195 = vld [vmem:[%s2187 + $0x38] sm:$0xff]
        %v2196 = vld [vmem:[%s2187 + $0x40] sm:$0xff]
        %v2197 = vld [vmem:[%s2187 + $0x48] sm:$0xff]
        %v2198 = vld [vmem:[%s2187 + $0x50] sm:$0xff]
        %v2199 = vld [vmem:[%s2187 + $0x58] sm:$0xff]
        %v2200 = vld [vmem:[%s2187 + $0x60] sm:$0xff]
        %v2201 = vld [vmem:[%s2187 + $0x68] sm:$0xff]
        %v2202 = vld [vmem:[%s2187 + $0x70] sm:$0xff]
        %v2203 = vld [vmem:[%s2187 + $0x78] sm:$0xff]
        %2220 = vrot.lane.b32.xlu0 %v1465, 64
        %v2221 = vpop.permute.xlu0 %2220
        %2222 = vrot.lane.b32.xlu0 %v1467, 64
        %v2223 = vpop.permute.xlu0 %2222
        %2224 = vrot.lane.b32.xlu0 %v1470, 64
        %v2225 = vpop.permute.xlu0 %2224
        %2226 = vrot.lane.b32.xlu0 %v1472, 64
        %v2227 = vpop.permute.xlu0 %2226
        %2228 = vrot.lane.b32.xlu0 %v1475, 64
        %v2229 = vpop.permute.xlu0 %2228
        %2230 = vrot.lane.b32.xlu0 %v1477, 64
        %v2231 = vpop.permute.xlu0 %2230
        %2232 = vrot.lane.b32.xlu0 %v1480, 64
        %v2233 = vpop.permute.xlu0 %2232
        %2234 = vrot.lane.b32.xlu0 %v1482, 64
        %v2235 = vpop.permute.xlu0 %2234
        %2236 = vrot.lane.b32.xlu0 %v1485, 64
        %v2237 = vpop.permute.xlu0 %2236
        %2238 = vrot.lane.b32.xlu0 %v1487, 64
        %v2239 = vpop.permute.xlu0 %2238
        %2240 = vrot.lane.b32.xlu0 %v1490, 64
        %v2241 = vpop.permute.xlu0 %2240
        %2242 = vrot.lane.b32.xlu0 %v1492, 64
        %v2243 = vpop.permute.xlu0 %2242
        %2244 = vrot.lane.b32.xlu0 %v1495, 64
        %v2245 = vpop.permute.xlu0 %2244
        %2246 = vrot.lane.b32.xlu0 %v1497, 64
        %v2247 = vpop.permute.xlu0 %2246
        %2248 = vrot.lane.b32.xlu0 %v1500, 64
        %v2249 = vpop.permute.xlu0 %2248
        %2250 = vrot.lane.b32.xlu0 %v1502, 64
        %v2251 = vpop.permute.xlu0 %2250
        %2268 = vmatpush.msra.mxu0 %v2251
        %2269 = vmatpush.msra.mxu0 %v2249
        %2270 = vmatpush.msra.mxu0 %v2247
        %2271 = vmatpush.msra.mxu0 %v2245
        %2272 = vmatpush.msra.mxu0 %v2243
        %2273 = vmatpush.msra.mxu0 %v2241
        %2274 = vmatpush.msra.mxu0 %v2239
        %2275 = vmatpush.msra.mxu0 %v2237
        %2276 = vmatpush.msra.mxu0 %v2235
        %2277 = vmatpush.msra.mxu0 %v2233
        %2278 = vmatpush.msra.mxu0 %v2231
        %2279 = vmatpush.msra.mxu0 %v2229
        %2280 = vmatpush.msra.mxu0 %v2227
        %2281 = vmatpush.msra.mxu0 %v2225
        %2282 = vmatpush.msra.mxu0 %v2223
        %2283 = vmatpush.msra.mxu0 %v2221
        %2284 = vmatmul.f32.gmra.mxu0 %v2188
        %v2285 = vpop.f32.mrf.mxu0
        %v2286 = vadd.f32 0.0, %v2285
        %2287 = vmatmul.f32.gmra.mxu0 %v2189
        %v2288 = vpop.f32.mrf.mxu0
        %v2289 = vadd.f32 0.0, %v2288
        %2290 = vmatmul.f32.gmra.mxu0 %v2190
        %v2291 = vpop.f32.mrf.mxu0
        %v2292 = vadd.f32 0.0, %v2291
        %2293 = vmatmul.f32.gmra.mxu0 %v2191
        %v2294 = vpop.f32.mrf.mxu0
        %v2295 = vadd.f32 0.0, %v2294
        %2296 = vmatmul.f32.gmra.mxu0 %v2192
        %v2297 = vpop.f32.mrf.mxu0
        %v2298 = vadd.f32 0.0, %v2297
        %2299 = vmatmul.f32.gmra.mxu0 %v2193
        %v2300 = vpop.f32.mrf.mxu0
        %v2301 = vadd.f32 0.0, %v2300
        %2302 = vmatmul.f32.gmra.mxu0 %v2194
        %v2303 = vpop.f32.mrf.mxu0
        %v2304 = vadd.f32 0.0, %v2303
        %2305 = vmatmul.f32.gmra.mxu0 %v2195
        %v2306 = vpop.f32.mrf.mxu0
        %v2307 = vadd.f32 0.0, %v2306
        %2308 = vmatmul.f32.gmra.mxu0 %v2196
        %v2309 = vpop.f32.mrf.mxu0
        %v2310 = vadd.f32 0.0, %v2309
        %2311 = vmatmul.f32.gmra.mxu0 %v2197
        %v2312 = vpop.f32.mrf.mxu0
        %v2313 = vadd.f32 0.0, %v2312
        %2314 = vmatmul.f32.gmra.mxu0 %v2198
        %v2315 = vpop.f32.mrf.mxu0
        %v2316 = vadd.f32 0.0, %v2315
        %2317 = vmatmul.f32.gmra.mxu0 %v2199
        %v2318 = vpop.f32.mrf.mxu0
        %v2319 = vadd.f32 0.0, %v2318
        %2320 = vmatmul.f32.gmra.mxu0 %v2200
        %v2321 = vpop.f32.mrf.mxu0
        %v2322 = vadd.f32 0.0, %v2321
        %2323 = vmatmul.f32.gmra.mxu0 %v2201
        %v2324 = vpop.f32.mrf.mxu0
        %v2325 = vadd.f32 0.0, %v2324
        %2326 = vmatmul.f32.gmra.mxu0 %v2202
        %v2327 = vpop.f32.mrf.mxu0
        %v2328 = vadd.f32 0.0, %v2327
        %2329 = vmatmul.f32.gmra.mxu0 %v2203
        %v2330 = vpop.f32.mrf.mxu0
        %v2331 = vadd.f32 0.0, %v2330
        %2332 = vdwg.mxu0
        %v2333 = vadd.f32 %v2171, %v2286
        %v2334 = vadd.f32 %v2172, %v2289
        %v2335 = vadd.f32 %v2173, %v2292
        %v2336 = vadd.f32 %v2174, %v2295
        %v2337 = vadd.f32 %v2175, %v2298
        %v2338 = vadd.f32 %v2176, %v2301
        %v2339 = vadd.f32 %v2177, %v2304
        %v2340 = vadd.f32 %v2178, %v2307
        %v2341 = vadd.f32 %v2179, %v2310
        %v2342 = vadd.f32 %v2180, %v2313
        %v2343 = vadd.f32 %v2181, %v2316
        %v2344 = vadd.f32 %v2182, %v2319
        %v2345 = vadd.f32 %v2183, %v2322
        %v2346 = vadd.f32 %v2184, %v2325
        %v2347 = vadd.f32 %v2185, %v2328
        %v2348 = vadd.f32 %v2186, %v2331
        %s2349 = scalar_lea.vmem [#allocation6], 768
        %v2350 = vld [vmem:[%s2349] sm:$0xff]
        %v2351 = vld [vmem:[%s2349 + $0x8] sm:$0xff]
        %v2352 = vld [vmem:[%s2349 + $0x10] sm:$0xff]
        %v2353 = vld [vmem:[%s2349 + $0x18] sm:$0xff]
        %v2354 = vld [vmem:[%s2349 + $0x20] sm:$0xff]
        %v2355 = vld [vmem:[%s2349 + $0x28] sm:$0xff]
        %v2356 = vld [vmem:[%s2349 + $0x30] sm:$0xff]
        %v2357 = vld [vmem:[%s2349 + $0x38] sm:$0xff]
        %v2358 = vld [vmem:[%s2349 + $0x40] sm:$0xff]
        %v2359 = vld [vmem:[%s2349 + $0x48] sm:$0xff]
        %v2360 = vld [vmem:[%s2349 + $0x50] sm:$0xff]
        %v2361 = vld [vmem:[%s2349 + $0x58] sm:$0xff]
        %v2362 = vld [vmem:[%s2349 + $0x60] sm:$0xff]
        %v2363 = vld [vmem:[%s2349 + $0x68] sm:$0xff]
        %v2364 = vld [vmem:[%s2349 + $0x70] sm:$0xff]
        %v2365 = vld [vmem:[%s2349 + $0x78] sm:$0xff]
        %2366 = vmatpush.msra.mxu0 %v1551
        %2367 = vmatpush.msra.mxu0 %v1549
        %2368 = vmatpush.msra.mxu0 %v1546
        %2369 = vmatpush.msra.mxu0 %v1544
        %2370 = vmatpush.msra.mxu0 %v1541
        %2371 = vmatpush.msra.mxu0 %v1539
        %2372 = vmatpush.msra.mxu0 %v1536
        %2373 = vmatpush.msra.mxu0 %v1534
        %2374 = vmatpush.msra.mxu0 %v1531
        %2375 = vmatpush.msra.mxu0 %v1529
        %2376 = vmatpush.msra.mxu0 %v1526
        %2377 = vmatpush.msra.mxu0 %v1524
        %2378 = vmatpush.msra.mxu0 %v1521
        %2379 = vmatpush.msra.mxu0 %v1519
        %2380 = vmatpush.msra.mxu0 %v1516
        %2381 = vmatpush.msra.mxu0 %v1514
        %2382 = vmatmul.f32.gmra.mxu0 %v2350
        %v2383 = vpop.f32.mrf.mxu0
        %v2384 = vadd.f32 0.0, %v2383
        %2385 = vmatmul.f32.gmra.mxu0 %v2351
        %v2386 = vpop.f32.mrf.mxu0
        %v2387 = vadd.f32 0.0, %v2386
        %2388 = vmatmul.f32.gmra.mxu0 %v2352
        %v2389 = vpop.f32.mrf.mxu0
        %v2390 = vadd.f32 0.0, %v2389
        %2391 = vmatmul.f32.gmra.mxu0 %v2353
        %v2392 = vpop.f32.mrf.mxu0
        %v2393 = vadd.f32 0.0, %v2392
        %2394 = vmatmul.f32.gmra.mxu0 %v2354
        %v2395 = vpop.f32.mrf.mxu0
        %v2396 = vadd.f32 0.0, %v2395
        %2397 = vmatmul.f32.gmra.mxu0 %v2355
        %v2398 = vpop.f32.mrf.mxu0
        %v2399 = vadd.f32 0.0, %v2398
        %2400 = vmatmul.f32.gmra.mxu0 %v2356
        %v2401 = vpop.f32.mrf.mxu0
        %v2402 = vadd.f32 0.0, %v2401
        %2403 = vmatmul.f32.gmra.mxu0 %v2357
        %v2404 = vpop.f32.mrf.mxu0
        %v2405 = vadd.f32 0.0, %v2404
        %2406 = vmatmul.f32.gmra.mxu0 %v2358
        %v2407 = vpop.f32.mrf.mxu0
        %v2408 = vadd.f32 0.0, %v2407
        %2409 = vmatmul.f32.gmra.mxu0 %v2359
        %v2410 = vpop.f32.mrf.mxu0
        %v2411 = vadd.f32 0.0, %v2410
        %2412 = vmatmul.f32.gmra.mxu0 %v2360
        %v2413 = vpop.f32.mrf.mxu0
        %v2414 = vadd.f32 0.0, %v2413
        %2415 = vmatmul.f32.gmra.mxu0 %v2361
        %v2416 = vpop.f32.mrf.mxu0
        %v2417 = vadd.f32 0.0, %v2416
        %2418 = vmatmul.f32.gmra.mxu0 %v2362
        %v2419 = vpop.f32.mrf.mxu0
        %v2420 = vadd.f32 0.0, %v2419
        %2421 = vmatmul.f32.gmra.mxu0 %v2363
        %v2422 = vpop.f32.mrf.mxu0
        %v2423 = vadd.f32 0.0, %v2422
        %2424 = vmatmul.f32.gmra.mxu0 %v2364
        %v2425 = vpop.f32.mrf.mxu0
        %v2426 = vadd.f32 0.0, %v2425
        %2427 = vmatmul.f32.gmra.mxu0 %v2365
        %v2428 = vpop.f32.mrf.mxu0
        %v2429 = vadd.f32 0.0, %v2428
        %2430 = vdwg.mxu0
        %v2431 = vadd.f32 %v2333, %v2384
        %v2432 = vadd.f32 %v2334, %v2387
        %v2433 = vadd.f32 %v2335, %v2390
        %v2434 = vadd.f32 %v2336, %v2393
        %v2435 = vadd.f32 %v2337, %v2396
        %v2436 = vadd.f32 %v2338, %v2399
        %v2437 = vadd.f32 %v2339, %v2402
        %v2438 = vadd.f32 %v2340, %v2405
        %v2439 = vadd.f32 %v2341, %v2408
        %v2440 = vadd.f32 %v2342, %v2411
        %v2441 = vadd.f32 %v2343, %v2414
        %v2442 = vadd.f32 %v2344, %v2417
        %v2443 = vadd.f32 %v2345, %v2420
        %v2444 = vadd.f32 %v2346, %v2423
        %v2445 = vadd.f32 %v2347, %v2426
        %v2446 = vadd.f32 %v2348, %v2429
        %s2447 = scalar_lea.vmem [#allocation6], 896
        %v2448 = vld [vmem:[%s2447] sm:$0xff]
        %v2449 = vld [vmem:[%s2447 + $0x8] sm:$0xff]
        %v2450 = vld [vmem:[%s2447 + $0x10] sm:$0xff]
        %v2451 = vld [vmem:[%s2447 + $0x18] sm:$0xff]
        %v2452 = vld [vmem:[%s2447 + $0x20] sm:$0xff]
        %v2453 = vld [vmem:[%s2447 + $0x28] sm:$0xff]
        %v2454 = vld [vmem:[%s2447 + $0x30] sm:$0xff]
        %v2455 = vld [vmem:[%s2447 + $0x38] sm:$0xff]
        %v2456 = vld [vmem:[%s2447 + $0x40] sm:$0xff]
        %v2457 = vld [vmem:[%s2447 + $0x48] sm:$0xff]
        %v2458 = vld [vmem:[%s2447 + $0x50] sm:$0xff]
        %v2459 = vld [vmem:[%s2447 + $0x58] sm:$0xff]
        %v2460 = vld [vmem:[%s2447 + $0x60] sm:$0xff]
        %v2461 = vld [vmem:[%s2447 + $0x68] sm:$0xff]
        %v2462 = vld [vmem:[%s2447 + $0x70] sm:$0xff]
        %v2463 = vld [vmem:[%s2447 + $0x78] sm:$0xff]
        %2480 = vrot.lane.b32.xlu0 %v1514, 64
        %v2481 = vpop.permute.xlu0 %2480
        %2482 = vrot.lane.b32.xlu0 %v1516, 64
        %v2483 = vpop.permute.xlu0 %2482
        %2484 = vrot.lane.b32.xlu0 %v1519, 64
        %v2485 = vpop.permute.xlu0 %2484
        %2486 = vrot.lane.b32.xlu0 %v1521, 64
        %v2487 = vpop.permute.xlu0 %2486
        %2488 = vrot.lane.b32.xlu0 %v1524, 64
        %v2489 = vpop.permute.xlu0 %2488
        %2490 = vrot.lane.b32.xlu0 %v1526, 64
        %v2491 = vpop.permute.xlu0 %2490
        %2492 = vrot.lane.b32.xlu0 %v1529, 64
        %v2493 = vpop.permute.xlu0 %2492
        %2494 = vrot.lane.b32.xlu0 %v1531, 64
        %v2495 = vpop.permute.xlu0 %2494
        %2496 = vrot.lane.b32.xlu0 %v1534, 64
        %v2497 = vpop.permute.xlu0 %2496
        %2498 = vrot.lane.b32.xlu0 %v1536, 64
        %v2499 = vpop.permute.xlu0 %2498
        %2500 = vrot.lane.b32.xlu0 %v1539, 64
        %v2501 = vpop.permute.xlu0 %2500
        %2502 = vrot.lane.b32.xlu0 %v1541, 64
        %v2503 = vpop.permute.xlu0 %2502
        %2504 = vrot.lane.b32.xlu0 %v1544, 64
        %v2505 = vpop.permute.xlu0 %2504
        %2506 = vrot.lane.b32.xlu0 %v1546, 64
        %v2507 = vpop.permute.xlu0 %2506
        %2508 = vrot.lane.b32.xlu0 %v1549, 64
        %v2509 = vpop.permute.xlu0 %2508
        %2510 = vrot.lane.b32.xlu0 %v1551, 64
        %v2511 = vpop.permute.xlu0 %2510
        %2528 = vmatpush.msra.mxu0 %v2511
        %2529 = vmatpush.msra.mxu0 %v2509
        %2530 = vmatpush.msra.mxu0 %v2507
        %2531 = vmatpush.msra.mxu0 %v2505
        %2532 = vmatpush.msra.mxu0 %v2503
        %2533 = vmatpush.msra.mxu0 %v2501
        %2534 = vmatpush.msra.mxu0 %v2499
        %2535 = vmatpush.msra.mxu0 %v2497
        %2536 = vmatpush.msra.mxu0 %v2495
        %2537 = vmatpush.msra.mxu0 %v2493
        %2538 = vmatpush.msra.mxu0 %v2491
        %2539 = vmatpush.msra.mxu0 %v2489
        %2540 = vmatpush.msra.mxu0 %v2487
        %2541 = vmatpush.msra.mxu0 %v2485
        %2542 = vmatpush.msra.mxu0 %v2483
        %2543 = vmatpush.msra.mxu0 %v2481
        %2544 = vmatmul.f32.gmra.mxu0 %v2448
        %v2545 = vpop.f32.mrf.mxu0
        %v2546 = vadd.f32 0.0, %v2545
        %2547 = vmatmul.f32.gmra.mxu0 %v2449
        %v2548 = vpop.f32.mrf.mxu0
        %v2549 = vadd.f32 0.0, %v2548
        %2550 = vmatmul.f32.gmra.mxu0 %v2450
        %v2551 = vpop.f32.mrf.mxu0
        %v2552 = vadd.f32 0.0, %v2551
        %2553 = vmatmul.f32.gmra.mxu0 %v2451
        %v2554 = vpop.f32.mrf.mxu0
        %v2555 = vadd.f32 0.0, %v2554
        %2556 = vmatmul.f32.gmra.mxu0 %v2452
        %v2557 = vpop.f32.mrf.mxu0
        %v2558 = vadd.f32 0.0, %v2557
        %2559 = vmatmul.f32.gmra.mxu0 %v2453
        %v2560 = vpop.f32.mrf.mxu0
        %v2561 = vadd.f32 0.0, %v2560
        %2562 = vmatmul.f32.gmra.mxu0 %v2454
        %v2563 = vpop.f32.mrf.mxu0
        %v2564 = vadd.f32 0.0, %v2563
        %2565 = vmatmul.f32.gmra.mxu0 %v2455
        %v2566 = vpop.f32.mrf.mxu0
        %v2567 = vadd.f32 0.0, %v2566
        %2568 = vmatmul.f32.gmra.mxu0 %v2456
        %v2569 = vpop.f32.mrf.mxu0
        %v2570 = vadd.f32 0.0, %v2569
        %2571 = vmatmul.f32.gmra.mxu0 %v2457
        %v2572 = vpop.f32.mrf.mxu0
        %v2573 = vadd.f32 0.0, %v2572
        %2574 = vmatmul.f32.gmra.mxu0 %v2458
        %v2575 = vpop.f32.mrf.mxu0
        %v2576 = vadd.f32 0.0, %v2575
        %2577 = vmatmul.f32.gmra.mxu0 %v2459
        %v2578 = vpop.f32.mrf.mxu0
        %v2579 = vadd.f32 0.0, %v2578
        %2580 = vmatmul.f32.gmra.mxu0 %v2460
        %v2581 = vpop.f32.mrf.mxu0
        %v2582 = vadd.f32 0.0, %v2581
        %2583 = vmatmul.f32.gmra.mxu0 %v2461
        %v2584 = vpop.f32.mrf.mxu0
        %v2585 = vadd.f32 0.0, %v2584
        %2586 = vmatmul.f32.gmra.mxu0 %v2462
        %v2587 = vpop.f32.mrf.mxu0
        %v2588 = vadd.f32 0.0, %v2587
        %2589 = vmatmul.f32.gmra.mxu0 %v2463
        %v2590 = vpop.f32.mrf.mxu0
        %v2591 = vadd.f32 0.0, %v2590
        %2592 = vdwg.mxu0
        %v2593 = vadd.f32 %v2431, %v2546
        %v2594 = vadd.f32 %v2432, %v2549
        %v2595 = vadd.f32 %v2433, %v2552
        %v2596 = vadd.f32 %v2434, %v2555
        %v2597 = vadd.f32 %v2435, %v2558
        %v2598 = vadd.f32 %v2436, %v2561
        %v2599 = vadd.f32 %v2437, %v2564
        %v2600 = vadd.f32 %v2438, %v2567
        %v2601 = vadd.f32 %v2439, %v2570
        %v2602 = vadd.f32 %v2440, %v2573
        %v2603 = vadd.f32 %v2441, %v2576
        %v2604 = vadd.f32 %v2442, %v2579
        %v2605 = vadd.f32 %v2443, %v2582
        %v2606 = vadd.f32 %v2444, %v2585
        %v2607 = vadd.f32 %v2445, %v2588
        %v2608 = vadd.f32 %v2446, %v2591
        %s2609 = scalar_lea.vmem [#allocation6], 1024
        %v2610 = vld [vmem:[%s2609] sm:$0xff]
        %v2611 = vld [vmem:[%s2609 + $0x8] sm:$0xff]
        %v2612 = vld [vmem:[%s2609 + $0x10] sm:$0xff]
        %v2613 = vld [vmem:[%s2609 + $0x18] sm:$0xff]
        %v2614 = vld [vmem:[%s2609 + $0x20] sm:$0xff]
        %v2615 = vld [vmem:[%s2609 + $0x28] sm:$0xff]
        %v2616 = vld [vmem:[%s2609 + $0x30] sm:$0xff]
        %v2617 = vld [vmem:[%s2609 + $0x38] sm:$0xff]
        %v2618 = vld [vmem:[%s2609 + $0x40] sm:$0xff]
        %v2619 = vld [vmem:[%s2609 + $0x48] sm:$0xff]
        %v2620 = vld [vmem:[%s2609 + $0x50] sm:$0xff]
        %v2621 = vld [vmem:[%s2609 + $0x58] sm:$0xff]
        %v2622 = vld [vmem:[%s2609 + $0x60] sm:$0xff]
        %v2623 = vld [vmem:[%s2609 + $0x68] sm:$0xff]
        %v2624 = vld [vmem:[%s2609 + $0x70] sm:$0xff]
        %v2625 = vld [vmem:[%s2609 + $0x78] sm:$0xff]
        %2626 = vmatpush.msra.mxu0 %v1600
        %2627 = vmatpush.msra.mxu0 %v1598
        %2628 = vmatpush.msra.mxu0 %v1595
        %2629 = vmatpush.msra.mxu0 %v1593
        %2630 = vmatpush.msra.mxu0 %v1590
        %2631 = vmatpush.msra.mxu0 %v1588
        %2632 = vmatpush.msra.mxu0 %v1585
        %2633 = vmatpush.msra.mxu0 %v1583
        %2634 = vmatpush.msra.mxu0 %v1580
        %2635 = vmatpush.msra.mxu0 %v1578
        %2636 = vmatpush.msra.mxu0 %v1575
        %2637 = vmatpush.msra.mxu0 %v1573
        %2638 = vmatpush.msra.mxu0 %v1570
        %2639 = vmatpush.msra.mxu0 %v1568
        %2640 = vmatpush.msra.mxu0 %v1565
        %2641 = vmatpush.msra.mxu0 %v1563
        %2642 = vmatmul.f32.gmra.mxu0 %v2610
        %v2643 = vpop.f32.mrf.mxu0
        %v2644 = vadd.f32 0.0, %v2643
        %2645 = vmatmul.f32.gmra.mxu0 %v2611
        %v2646 = vpop.f32.mrf.mxu0
        %v2647 = vadd.f32 0.0, %v2646
        %2648 = vmatmul.f32.gmra.mxu0 %v2612
        %v2649 = vpop.f32.mrf.mxu0
        %v2650 = vadd.f32 0.0, %v2649
        %2651 = vmatmul.f32.gmra.mxu0 %v2613
        %v2652 = vpop.f32.mrf.mxu0
        %v2653 = vadd.f32 0.0, %v2652
        %2654 = vmatmul.f32.gmra.mxu0 %v2614
        %v2655 = vpop.f32.mrf.mxu0
        %v2656 = vadd.f32 0.0, %v2655
        %2657 = vmatmul.f32.gmra.mxu0 %v2615
        %v2658 = vpop.f32.mrf.mxu0
        %v2659 = vadd.f32 0.0, %v2658
        %2660 = vmatmul.f32.gmra.mxu0 %v2616
        %v2661 = vpop.f32.mrf.mxu0
        %v2662 = vadd.f32 0.0, %v2661
        %2663 = vmatmul.f32.gmra.mxu0 %v2617
        %v2664 = vpop.f32.mrf.mxu0
        %v2665 = vadd.f32 0.0, %v2664
        %2666 = vmatmul.f32.gmra.mxu0 %v2618
        %v2667 = vpop.f32.mrf.mxu0
        %v2668 = vadd.f32 0.0, %v2667
        %2669 = vmatmul.f32.gmra.mxu0 %v2619
        %v2670 = vpop.f32.mrf.mxu0
        %v2671 = vadd.f32 0.0, %v2670
        %2672 = vmatmul.f32.gmra.mxu0 %v2620
        %v2673 = vpop.f32.mrf.mxu0
        %v2674 = vadd.f32 0.0, %v2673
        %2675 = vmatmul.f32.gmra.mxu0 %v2621
        %v2676 = vpop.f32.mrf.mxu0
        %v2677 = vadd.f32 0.0, %v2676
        %2678 = vmatmul.f32.gmra.mxu0 %v2622
        %v2679 = vpop.f32.mrf.mxu0
        %v2680 = vadd.f32 0.0, %v2679
        %2681 = vmatmul.f32.gmra.mxu0 %v2623
        %v2682 = vpop.f32.mrf.mxu0
        %v2683 = vadd.f32 0.0, %v2682
        %2684 = vmatmul.f32.gmra.mxu0 %v2624
        %v2685 = vpop.f32.mrf.mxu0
        %v2686 = vadd.f32 0.0, %v2685
        %2687 = vmatmul.f32.gmra.mxu0 %v2625
        %v2688 = vpop.f32.mrf.mxu0
        %v2689 = vadd.f32 0.0, %v2688
        %2690 = vdwg.mxu0
        %v2691 = vadd.f32 %v2593, %v2644
        %v2692 = vadd.f32 %v2594, %v2647
        %v2693 = vadd.f32 %v2595, %v2650
        %v2694 = vadd.f32 %v2596, %v2653
        %v2695 = vadd.f32 %v2597, %v2656
        %v2696 = vadd.f32 %v2598, %v2659
        %v2697 = vadd.f32 %v2599, %v2662
        %v2698 = vadd.f32 %v2600, %v2665
        %v2699 = vadd.f32 %v2601, %v2668
        %v2700 = vadd.f32 %v2602, %v2671
        %v2701 = vadd.f32 %v2603, %v2674
        %v2702 = vadd.f32 %v2604, %v2677
        %v2703 = vadd.f32 %v2605, %v2680
        %v2704 = vadd.f32 %v2606, %v2683
        %v2705 = vadd.f32 %v2607, %v2686
        %v2706 = vadd.f32 %v2608, %v2689
        %v2707 = vld [vmem:[%s12] sm:$0x1]
        %v2709 = vperm.slane %v2707, 0
        %v2711 = vmul.f32 %v2691, %v2709
        %v2712 = vmul.f32 %v2692, %v2709
        %v2713 = vmul.f32 %v2693, %v2709
        %v2714 = vmul.f32 %v2694, %v2709
        %v2715 = vmul.f32 %v2695, %v2709
        %v2716 = vmul.f32 %v2696, %v2709
        %v2717 = vmul.f32 %v2697, %v2709
        %v2718 = vmul.f32 %v2698, %v2709
        %v2719 = vmul.f32 %v2699, %v2709
        %v2720 = vmul.f32 %v2700, %v2709
        %v2721 = vmul.f32 %v2701, %v2709
        %v2722 = vmul.f32 %v2702, %v2709
        %v2723 = vmul.f32 %v2703, %v2709
        %v2724 = vmul.f32 %v2704, %v2709
        %v2725 = vmul.f32 %v2705, %v2709
        %v2726 = vmul.f32 %v2706, %v2709
        %v2727 = vld [vmem:[%s13] sm:$0x1]
        %v2729 = vperm.slane %v2727, 0
        %v2731 = vadd.f32 %v2711, %v2729
        %v2732 = vadd.f32 %v2712, %v2729
        %v2733 = vadd.f32 %v2713, %v2729
        %v2734 = vadd.f32 %v2714, %v2729
        %v2735 = vadd.f32 %v2715, %v2729
        %v2736 = vadd.f32 %v2716, %v2729
        %v2737 = vadd.f32 %v2717, %v2729
        %v2738 = vadd.f32 %v2718, %v2729
        %v2739 = vadd.f32 %v2719, %v2729
        %v2740 = vadd.f32 %v2720, %v2729
        %v2741 = vadd.f32 %v2721, %v2729
        %v2742 = vadd.f32 %v2722, %v2729
        %v2743 = vadd.f32 %v2723, %v2729
        %v2744 = vadd.f32 %v2724, %v2729
        %v2745 = vadd.f32 %v2725, %v2729
        %v2746 = vadd.f32 %v2726, %v2729
        %v2747 = vmax.f32 %v2731, 0.0
        %v2748 = vmax.f32 %v2732, 0.0
        %v2749 = vmax.f32 %v2733, 0.0
        %v2750 = vmax.f32 %v2734, 0.0
        %v2751 = vmax.f32 %v2735, 0.0
        %v2752 = vmax.f32 %v2736, 0.0
        %v2753 = vmax.f32 %v2737, 0.0
        %v2754 = vmax.f32 %v2738, 0.0
        %v2755 = vmax.f32 %v2739, 0.0
        %v2756 = vmax.f32 %v2740, 0.0
        %v2757 = vmax.f32 %v2741, 0.0
        %v2758 = vmax.f32 %v2742, 0.0
        %v2759 = vmax.f32 %v2743, 0.0
        %v2760 = vmax.f32 %v2744, 0.0
        %v2761 = vmax.f32 %v2745, 0.0
        %v2762 = vmax.f32 %v2746, 0.0
        %2771 = vrot.lane.b32.xlu0 %v2755, 64
        %v2772 = vpop.permute.xlu0 %2771
        %2773 = vrot.lane.b32.xlu0 %v2756, 64
        %v2774 = vpop.permute.xlu0 %2773
        %2775 = vrot.lane.b32.xlu0 %v2757, 64
        %v2776 = vpop.permute.xlu0 %2775
        %2777 = vrot.lane.b32.xlu0 %v2758, 64
        %v2778 = vpop.permute.xlu0 %2777
        %2779 = vrot.lane.b32.xlu0 %v2759, 64
        %v2780 = vpop.permute.xlu0 %2779
        %2781 = vrot.lane.b32.xlu0 %v2760, 64
        %v2782 = vpop.permute.xlu0 %2781
        %2783 = vrot.lane.b32.xlu0 %v2761, 64
        %v2784 = vpop.permute.xlu0 %2783
        %2785 = vrot.lane.b32.xlu0 %v2762, 64
        %v2786 = vpop.permute.xlu0 %2785
        %v2795 = vsel %vm646, %v2747, %v2772
        %v2796 = vsel %vm646, %v2748, %v2774
        %v2797 = vsel %vm646, %v2749, %v2776
        %v2798 = vsel %vm646, %v2750, %v2778
        %v2799 = vsel %vm646, %v2751, %v2780
        %v2800 = vsel %vm646, %v2752, %v2782
        %v2801 = vsel %vm646, %v2753, %v2784
        %v2802 = vsel %vm646, %v2754, %v2786
        %2803 = vst [vmem:[%s542] sm:$0xff] %v2795
        %2804 = vst [vmem:[%s542 + $0x8] sm:$0xff] %v2796
        %2805 = vst [vmem:[%s542 + $0x10] sm:$0xff] %v2797
        %2806 = vst [vmem:[%s542 + $0x18] sm:$0xff] %v2798
        %2807 = vst [vmem:[%s542 + $0x20] sm:$0xff] %v2799
        %2808 = vst [vmem:[%s542 + $0x28] sm:$0xff] %v2800
        %2809 = vst [vmem:[%s542 + $0x30] sm:$0xff] %v2801
        %2810 = vst [vmem:[%s542 + $0x38] sm:$0xff] %v2802
        %p2811 = scmp.lt.s32.totalorder %s29, 1
        %s2812 = scalar_select %p2811, %s29, 1
        %s2813 = smul.addr %s2812, 8
        %s2814 = smul.addr %s2813, 8
        %s2815 = scalar_lea.vmem %s14, %s2814
        // Predicated region
        $region89: #{fuse_reduce_forward.1} parent=75 // pred_check
          %p2816 = pneg %p351
        $region90: #{fuse_reduce_forward.1} parent=75 // pred_check_branch
          %2818 = sbr.rel (%p2816) target = $region92
        $region91: #{fuse_reduce_forward.1} parent=75 // pred_region
          _
        $region92: #{fuse_reduce_forward.1} parent=75 // pred_fallthru
          _
      $region76: #{fuse_reduce_forward.1} parent=5 // pred_fallthru
        _
      %p2819 = scmp.le.s32.totalorder 2, %s24
      // Predicated region
      $region93: #{fuse_reduce_forward.1} parent=5 // pred_check
        %p2820 = pneg %p2819
      $region94: #{fuse_reduce_forward.1} parent=5 // pred_check_branch
        %2822 = sbr.rel (%p2820) target = $region96
      $region95: #{fuse_reduce_forward.1} parent=5 // pred_region
        %s2823 = ssub.s32 %s24, 2
        // Predicated region
        $region97: #{fuse_reduce_forward.1} parent=95 // pred_check
          %p2824 = pneg %p357
        $region98: #{fuse_reduce_forward.1} parent=95 // pred_check_branch
          %2826 = sbr.rel (%p2824) target = $region100
        $region99: #{fuse_reduce_forward.1} parent=95 // pred_region
          %p2827 = scmp.lt.s32.totalorder %s30, 1
          %s2828 = scalar_select %p2827, %s30, 1
          %s2829 = smul.addr %s2828, 8
          %s2830 = smul.addr %s2829, 8
          %s2831 = scalar_lea.vmem %s14, %s2830
        $region100: #{fuse_reduce_forward.1} parent=95 // pred_fallthru
          _
      $region96: #{fuse_reduce_forward.1} parent=5 // pred_fallthru
        _
    $region6: #{fuse_reduce_forward.1} parent=1 // loop_footer
      %s28 = sadd.s32 1, %s24
    $region7: #{fuse_reduce_forward.1} parent=1 // loop_footer_branch
      %23 = sbr.rel target = $region3
    $region8: #{fuse_reduce_forward.1} parent=1 // loop_exit
      _
    %2832 = vsyncpa [#allocation3], 1
    %s2833 = scalar_lea.sflag [#allocation3], 1
    %2834 = vsyncpa %s2833, 1
    %2835 = vsyncpa [#allocation5], 1

</llo_original>
